<compile_context>
chip_gen: v7x
topology: tpu7x:2x2x1
jax: 0.10.0
libtpu: 0.0.40
codegen_flags: <defaults>
</compile_context>

<pallas_src>
import jax
import jax.numpy as jnp
from jax.experimental import pallas as pl
from jax.experimental.pallas import tpu as pltpu


def _make_down_final_kernel(W):
    """Build the fused kernel, closing over the static image row width W."""

    def kernel(x4_ref, x3_ref, x2_ref, x1_ref,
               w1_ref, b1_ref, w2_ref, b2_ref, cm_ref,
               o_ref, cat_ref):
        # x?_ref : (1, C_i, HW)      flattened NCHW inputs for one batch element
        # w1_ref : (9, Cout, Cin)    BN-folded per-tap weights, tap t = dy*3 + dx
        # b1_ref : (Cout, 1)         folded bias, stage 1
        # w2_ref : (9, Cout, Cout)   stage 2 per-tap weights
        # b2_ref : (Cout, 1)         stage 2 bias
        # cm_ref : (2, HW)           [0]=zero at col W-1 (dx=0 src), [1]=zero at col 0 (dx=2 src)
        # o_ref  : (1, Cout, HW)
        # cat_ref: (Cin, HW) VMEM    stage-1 activation gathered in channel order [x4,x3,x2,x1]
        Cout = o_ref.shape[1]
        HW = o_ref.shape[2]

        cm = cm_ref[...]
        src_left = cm[0:1, :]     # multiply source for dx == 0 taps (kills row-wrap reads)
        src_right = cm[1:2, :]    # multiply source for dx == 2 taps

        # Destination-row masks for the dy = +/-1 tap groups, built in-kernel.
        pos = jax.lax.broadcasted_iota(jnp.int32, (1, HW), 1)
        dst_top = (pos >= W).astype(jnp.float32)          # zero dest row 0   (dy == 0 group)
        dst_bot = (pos < HW - W).astype(jnp.float32)      # zero dest row H-1 (dy == 2 group)

        def conv_bn_relu(act, w_ref, bias):
            # act: (cin, HW). Each tap is a lane rotation (XLU) of a pre-masked
            # source followed by a small (Cout, cin) x (cin, HW) matmul, summed
            # into one accumulator per kernel row (dy). Row validity is applied
            # once per accumulator.
            srcs = (act * src_left, act, act * src_right)  # indexed by dx
            groups = []
            for dy in range(3):
                acc = None
                for dx in range(3):
                    s = (dy - 1) * W + (dx - 1)
                    src = srcs[dx]
                    if s == 0:
                        shifted = src
                    else:
                        shifted = pltpu.roll(src, shift=(-s) % HW, axis=1)
                    part = jnp.dot(w_ref[dy * 3 + dx], shifted,
                                   preferred_element_type=jnp.float32)
                    acc = part if acc is None else acc + part
                groups.append(acc)
            y = groups[0] * dst_top + groups[1] + groups[2] * dst_bot
            return jnp.maximum(y + bias, 0.0)

        # Gather the four inputs into VMEM in the PyTorch concat order
        # [x4, x3, x2, x1] — the concat never touches HBM.
        off = 0
        for r in (x4_ref, x3_ref, x2_ref, x1_ref):
            c = r.shape[1]
            cat_ref[off:off + c, :] = r[0]
            off += c

        y1 = conv_bn_relu(cat_ref[...], w1_ref, b1_ref[...])   # (Cout, HW), stays in VMEM
        y2 = conv_bn_relu(y1, w2_ref, b2_ref[...])              # (Cout, HW)
        o_ref[0] = y2.astype(o_ref.dtype)

    return kernel


def prepare_params(p, eps=1e-5):
    """Fold eval-mode BatchNorm into the conv weights/bias (one-time, at build)."""

    def fold(w, b, gamma, beta, mean, var):
        # w: (Cout, Cin, 3, 3) PyTorch OIHW; returns per-tap weights (9, Cout, Cin)
        # with tap index t = dy*3 + dx, matching the kernel's tap order.
        scale = gamma / jnp.sqrt(var + eps)                       # (Cout,)
        w_f = w * scale[:, None, None, None]
        bias = beta + scale * (b - mean)                          # (Cout,)
        co, ci = w.shape[0], w.shape[1]
        w_taps = jnp.transpose(w_f, (2, 3, 0, 1)).reshape(9, co, ci)
        return w_taps.astype(jnp.float32), bias.reshape(-1, 1).astype(jnp.float32)

    w1, b1 = fold(p["w1"], p["b1"], p["bn1_gamma"], p["bn1_beta"],
                  p["bn1_mean"], p["bn1_var"])
    w2, b2 = fold(p["w2"], p["b2"], p["bn2_gamma"], p["bn2_beta"],
                  p["bn2_mean"], p["bn2_var"])
    return {"w1": w1, "b1": b1, "w2": w2, "b2": b2}


def down_final_forward(prepared, x1, x2, x3, x4):
    """Inputs/outputs in NCHW (PyTorch convention). No HBM concat, no transposes."""
    N, _, H, W = x1.shape
    HW = H * W
    Cout = prepared["w1"].shape[1]

    # Free contiguous reshapes; torch.cat order in the module is [x4, x3, x2, x1].
    xs = [x.reshape(N, x.shape[1], HW).astype(jnp.float32) for x in (x4, x3, x2, x1)]
    Cin = sum(x.shape[1] for x in xs)

    # Column-boundary source masks (constant-folded by XLA; 2 KiB per step).
    col = jnp.arange(HW, dtype=jnp.int32) % W
    colmasks = jnp.stack([(col != (W - 1)).astype(jnp.float32),    # dx = 0 taps
                          (col != 0).astype(jnp.float32)], axis=0)  # dx = 2 taps

    kernel = _make_down_final_kernel(W)

    flops = int(N) * 2 * 9 * Cout * HW * (Cin + Cout)
    bytes_accessed = 4 * (N * (Cin + Cout) * HW           # activations in + out
                          + 9 * Cout * (Cin + Cout)        # folded weights
                          + 2 * Cout + 2 * HW)             # biases + masks

    # NOTE: for larger N, multiple images can be folded into one grid step to
    # amortize per-step overhead; at N=2 we keep one image per step so that
    # grid >= 2 and both v7x TensorCores get work via "parallel" semantics.
    out = pl.pallas_call(
        kernel,
        out_shape=jax.ShapeDtypeStruct((N, Cout, HW), jnp.float32),
        grid_spec=pltpu.PrefetchScalarGridSpec(
            num_scalar_prefetch=0,
            grid=(N,),
            in_specs=[pl.BlockSpec((1, x.shape[1], HW), lambda n: (n, 0, 0))
                      for x in xs] + [
                pl.BlockSpec((9, Cout, Cin), lambda n: (0, 0, 0)),
                pl.BlockSpec((Cout, 1), lambda n: (0, 0)),
                pl.BlockSpec((9, Cout, Cout), lambda n: (0, 0, 0)),
                pl.BlockSpec((Cout, 1), lambda n: (0, 0)),
                pl.BlockSpec((2, HW), lambda n: (0, 0)),
            ],
            out_specs=pl.BlockSpec((1, Cout, HW), lambda n: (n, 0, 0)),
            scratch_shapes=[pltpu.VMEM((Cin, HW), jnp.float32)],
        ),
        compiler_params=pltpu.CompilerParams(
            dimension_semantics=("parallel",)),
        cost_estimate=pl.CostEstimate(flops=flops, transcendentals=0,
                                      bytes_accessed=bytes_accessed),
    )(*xs, prepared["w1"], prepared["b1"], prepared["w2"], prepared["b2"], colmasks)

    return out.reshape(N, Cout, H, W)                              # NCHW, free reshape


def init_params(key, channel_in, channel_out):
    ks = jax.random.split(key, 10)
    p = {}
    # Conv weights in PyTorch OIHW layout.
    p["w1"] = 0.1 * jax.random.normal(ks[0], (channel_out, channel_in, 3, 3), jnp.float32)
    p["b1"] = 0.1 * jax.random.normal(ks[1], (channel_out,), jnp.float32)
    p["w2"] = 0.1 * jax.random.normal(ks[2], (channel_out, channel_out, 3, 3), jnp.float32)
    p["b2"] = 0.1 * jax.random.normal(ks[3], (channel_out,), jnp.float32)
    # BatchNorm (eval-mode) params.
    p["bn1_gamma"] = 1.0 + 0.1 * jax.random.normal(ks[4], (channel_out,), jnp.float32)
    p["bn1_beta"] = 0.1 * jax.random.normal(ks[5], (channel_out,), jnp.float32)
    p["bn1_mean"] = 0.1 * jax.random.normal(ks[6], (channel_out,), jnp.float32)
    p["bn1_var"] = 0.5 + jax.random.uniform(ks[7], (channel_out,), jnp.float32)
    p["bn2_gamma"] = 1.0 + 0.1 * jax.random.normal(ks[8], (channel_out,), jnp.float32)
    p["bn2_beta"] = 0.1 * jax.random.normal(ks[9], (channel_out,), jnp.float32)
    p["bn2_mean"] = jnp.zeros((channel_out,), jnp.float32)
    p["bn2_var"] = jnp.ones((channel_out,), jnp.float32)
    return p


def _reference_forward(params, x1, x2, x3, x4, eps=1e-5):
    """Pure-JAX reference matching the PyTorch module in eval mode."""
    x = jnp.concatenate([x4, x3, x2, x1], axis=1)

    def block(x, w, b, g, beta, mean, var):
        y = jax.lax.conv_general_dilated(
            x, w, window_strides=(1, 1), padding=((1, 1), (1, 1)),
            dimension_numbers=("NCHW", "OIHW", "NCHW"),
            precision=jax.lax.Precision.HIGHEST)
        y = y + b[None, :, None, None]
        y = (y - mean[None, :, None, None]) / jnp.sqrt(var[None, :, None, None] + eps)
        y = y * g[None, :, None, None] + beta[None, :, None, None]
        return jnp.maximum(y, 0.0)

    y = block(x, params["w1"], params["b1"], params["bn1_gamma"],
              params["bn1_beta"], params["bn1_mean"], params["bn1_var"])
    y = block(y, params["w2"], params["b2"], params["bn2_gamma"],
              params["bn2_beta"], params["bn2_mean"], params["bn2_var"])
    return y


if __name__ == "__main__":
    key = jax.random.PRNGKey(0)
    k1, k2, k3, k4, kp = jax.random.split(key, 5)

    N, C_each, H, W = 2, 4, 16, 16
    channel_in = 4 * C_each   # 16 after concatenation
    channel_out = 8

    x1 = jax.random.normal(k1, (N, C_each, H, W), jnp.float32)
    x2 = jax.random.normal(k2, (N, C_each, H, W), jnp.float32)
    x3 = jax.random.normal(k3, (N, C_each, H, W), jnp.float32)
    x4 = jax.random.normal(k4, (N, C_each, H, W), jnp.float32)

    params = init_params(kp, channel_in, channel_out)
    prepared = prepare_params(params)   # one-time BN fold into weights/bias

    out = down_final_forward(prepared, x1, x2, x3, x4)
    jax.block_until_ready(out)
    assert out.shape == (N, channel_out, H, W)

    ref = _reference_forward(params, x1, x2, x3, x4)
    err = float(jnp.max(jnp.abs(out - ref)))
    assert err < 3e-2, f"max abs err vs reference = {err}"

    print("KERNEL_OK")
</pallas_src>

<mosaic_0001>
module attributes {stable_mosaic.version = 11 : i64} {
  func.func @kernel(%arg0: i32, %arg1: memref<1x4x256xf32, #tpu.memory_space<vmem>>, %arg2: memref<1x4x256xf32, #tpu.memory_space<vmem>>, %arg3: memref<1x4x256xf32, #tpu.memory_space<vmem>>, %arg4: memref<1x4x256xf32, #tpu.memory_space<vmem>>, %arg5: memref<9x8x16xf32, #tpu.memory_space<vmem>>, %arg6: memref<8x1xf32, #tpu.memory_space<vmem>>, %arg7: memref<9x8x8xf32, #tpu.memory_space<vmem>>, %arg8: memref<8x1xf32, #tpu.memory_space<vmem>>, %arg9: memref<2x256xf32, #tpu.memory_space<vmem>>, %arg10: memref<1x8x256xf32, #tpu.memory_space<vmem>>, %arg11: memref<16x256xf32, #tpu.memory_space<vmem>>) attributes {dimension_semantics = [#tpu.dimension_semantics<parallel>], iteration_bounds = array<i64: 2>, scalar_prefetch = 0 : i64, scratch_operands = 1 : i64, tpu.core_type = #tpu.core_type<tc>, window_params = [{transform_indices = @transform_0, window_bounds = array<i64: 1, 4, 256>}, {transform_indices = @transform_1, window_bounds = array<i64: 1, 4, 256>}, {transform_indices = @transform_2, window_bounds = array<i64: 1, 4, 256>}, {transform_indices = @transform_3, window_bounds = array<i64: 1, 4, 256>}, {pipeline_mode = #tpu.pipeline_mode<synchronous>, transform_indices = @transform_4, window_bounds = array<i64: 9, 8, 16>}, {pipeline_mode = #tpu.pipeline_mode<synchronous>, transform_indices = @transform_5, window_bounds = array<i64: 8, 1>}, {pipeline_mode = #tpu.pipeline_mode<synchronous>, transform_indices = @transform_6, window_bounds = array<i64: 9, 8, 8>}, {pipeline_mode = #tpu.pipeline_mode<synchronous>, transform_indices = @transform_7, window_bounds = array<i64: 8, 1>}, {pipeline_mode = #tpu.pipeline_mode<synchronous>, transform_indices = @transform_8, window_bounds = array<i64: 2, 256>}, {transform_indices = @transform_9, window_bounds = array<i64: 1, 8, 256>}]} {
    %c0 = arith.constant 0 : index
    %c0_0 = arith.constant 0 : index
    %0 = vector.load %arg9[%c0, %c0_0] : memref<2x256xf32, #tpu.memory_space<vmem>>, vector<2x256xf32>
    %1 = vector.extract_strided_slice %0 {offsets = [0, 0], sizes = [1, 256], strides = [1, 1]} : vector<2x256xf32> to vector<1x256xf32>
    %2 = vector.extract_strided_slice %0 {offsets = [1, 0], sizes = [1, 256], strides = [1, 1]} : vector<2x256xf32> to vector<1x256xf32>
    %3 = tpu.iota {dimensions = array<i32: 1>} : vector<1x256xi32>
    %c16_i32 = arith.constant 16 : i32
    %4 = vector.broadcast %c16_i32 : i32 to vector<1x256xi32>
    %5 = arith.cmpi sge, %3, %4 : vector<1x256xi32>
    %6 = arith.extui %5 : vector<1x256xi1> to vector<1x256xi32>
    %7 = arith.sitofp %6 : vector<1x256xi32> to vector<1x256xf32>
    %c240_i32 = arith.constant 240 : i32
    %8 = vector.broadcast %c240_i32 : i32 to vector<1x256xi32>
    %9 = arith.cmpi slt, %3, %8 : vector<1x256xi32>
    %10 = arith.extui %9 : vector<1x256xi1> to vector<1x256xi32>
    %11 = arith.sitofp %10 : vector<1x256xi32> to vector<1x256xf32>
    %c0_1 = arith.constant 0 : index
    %c0_2 = arith.constant 0 : index
    %c0_3 = arith.constant 0 : index
    %12 = vector.load %arg1[%c0_1, %c0_2, %c0_3] : memref<1x4x256xf32, #tpu.memory_space<vmem>>, vector<1x4x256xf32>
    %13 = vector.shape_cast %12 : vector<1x4x256xf32> to vector<4x256xf32>
    %c0_4 = arith.constant 0 : index
    %c0_5 = arith.constant 0 : index
    %14 = vector.load %arg11[%c0_4, %c0_5] : memref<16x256xf32, #tpu.memory_space<vmem>>, vector<4x256xf32>
    tpu.vector_store %arg11[%c0_4, %c0_5], %13 {strides = array<i32>} : memref<16x256xf32, #tpu.memory_space<vmem>>, vector<4x256xf32>,
    %c0_6 = arith.constant 0 : index
    %c0_7 = arith.constant 0 : index
    %c0_8 = arith.constant 0 : index
    %15 = vector.load %arg2[%c0_6, %c0_7, %c0_8] : memref<1x4x256xf32, #tpu.memory_space<vmem>>, vector<1x4x256xf32>
    %16 = vector.shape_cast %15 : vector<1x4x256xf32> to vector<4x256xf32>
    %c4 = arith.constant 4 : index
    %c0_9 = arith.constant 0 : index
    %17 = vector.load %arg11[%c4, %c0_9] : memref<16x256xf32, #tpu.memory_space<vmem>>, vector<4x256xf32>
    tpu.vector_store %arg11[%c4, %c0_9], %16 {strides = array<i32>} : memref<16x256xf32, #tpu.memory_space<vmem>>, vector<4x256xf32>,
    %c0_10 = arith.constant 0 : index
    %c0_11 = arith.constant 0 : index
    %c0_12 = arith.constant 0 : index
    %18 = vector.load %arg3[%c0_10, %c0_11, %c0_12] : memref<1x4x256xf32, #tpu.memory_space<vmem>>, vector<1x4x256xf32>
    %19 = vector.shape_cast %18 : vector<1x4x256xf32> to vector<4x256xf32>
    %c8 = arith.constant 8 : index
    %c0_13 = arith.constant 0 : index
    %20 = vector.load %arg11[%c8, %c0_13] : memref<16x256xf32, #tpu.memory_space<vmem>>, vector<4x256xf32>
    tpu.vector_store %arg11[%c8, %c0_13], %19 {strides = array<i32>} : memref<16x256xf32, #tpu.memory_space<vmem>>, vector<4x256xf32>,
    %c0_14 = arith.constant 0 : index
    %c0_15 = arith.constant 0 : index
    %c0_16 = arith.constant 0 : index
    %21 = vector.load %arg4[%c0_14, %c0_15, %c0_16] : memref<1x4x256xf32, #tpu.memory_space<vmem>>, vector<1x4x256xf32>
    %22 = vector.shape_cast %21 : vector<1x4x256xf32> to vector<4x256xf32>
    %c12 = arith.constant 12 : index
    %c0_17 = arith.constant 0 : index
    %23 = vector.load %arg11[%c12, %c0_17] : memref<16x256xf32, #tpu.memory_space<vmem>>, vector<4x256xf32>
    tpu.vector_store %arg11[%c12, %c0_17], %22 {strides = array<i32>} : memref<16x256xf32, #tpu.memory_space<vmem>>, vector<4x256xf32>,
    %c0_18 = arith.constant 0 : index
    %c0_19 = arith.constant 0 : index
    %24 = vector.load %arg11[%c0_18, %c0_19] : memref<16x256xf32, #tpu.memory_space<vmem>>, vector<16x256xf32>
    %c0_20 = arith.constant 0 : index
    %c0_21 = arith.constant 0 : index
    %25 = vector.load %arg6[%c0_20, %c0_21] : memref<8x1xf32, #tpu.memory_space<vmem>>, vector<8x1xf32>
    %26 = vector.broadcast %1 : vector<1x256xf32> to vector<16x256xf32>
    %27 = arith.mulf %24, %26 : vector<16x256xf32>
    %28 = vector.broadcast %2 : vector<1x256xf32> to vector<16x256xf32>
    %29 = arith.mulf %24, %28 : vector<16x256xf32>
    %c17_i32 = arith.constant 17 : i32
    %30 = tpu.dynamic_rotate %27 by %c17_i32 dim 1 : vector<16x256xf32>, i32 -> vector<16x256xf32>
    %c0_22 = arith.constant 0 : index
    %c0_23 = arith.constant 0 : index
    %c0_24 = arith.constant 0 : index
    %31 = vector.load %arg5[%c0_22, %c0_23, %c0_24] : memref<9x8x16xf32, #tpu.memory_space<vmem>>, vector<1x8x16xf32>
    %32 = vector.shape_cast %31 : vector<1x8x16xf32> to vector<8x16xf32>
    %cst = arith.constant dense<0.000000e+00> : vector<8x256xf32>
    %33 = tpu.matmul %32, %30, %cst {dimension_numbers = #tpu.dot_dimension_numbers<[1], [0], [0], [1], [0, 0, 1, 1], [], []>} : vector<8x16xf32>, vector<16x256xf32>, vector<8x256xf32> -> vector<8x256xf32>
    %c16_i32_25 = arith.constant 16 : i32
    %34 = tpu.dynamic_rotate %24 by %c16_i32_25 dim 1 : vector<16x256xf32>, i32 -> vector<16x256xf32>
    %c1 = arith.constant 1 : index
    %c0_26 = arith.constant 0 : index
    %c0_27 = arith.constant 0 : index
    %35 = vector.load %arg5[%c1, %c0_26, %c0_27] : memref<9x8x16xf32, #tpu.memory_space<vmem>>, vector<1x8x16xf32>
    %36 = vector.shape_cast %35 : vector<1x8x16xf32> to vector<8x16xf32>
    %cst_28 = arith.constant dense<0.000000e+00> : vector<8x256xf32>
    %37 = tpu.matmul %36, %34, %cst_28 {dimension_numbers = #tpu.dot_dimension_numbers<[1], [0], [0], [1], [0, 0, 1, 1], [], []>} : vector<8x16xf32>, vector<16x256xf32>, vector<8x256xf32> -> vector<8x256xf32>
    %38 = arith.addf %33, %37 : vector<8x256xf32>
    %c15_i32 = arith.constant 15 : i32
    %39 = tpu.dynamic_rotate %29 by %c15_i32 dim 1 : vector<16x256xf32>, i32 -> vector<16x256xf32>
    %c2 = arith.constant 2 : index
    %c0_29 = arith.constant 0 : index
    %c0_30 = arith.constant 0 : index
    %40 = vector.load %arg5[%c2, %c0_29, %c0_30] : memref<9x8x16xf32, #tpu.memory_space<vmem>>, vector<1x8x16xf32>
    %41 = vector.shape_cast %40 : vector<1x8x16xf32> to vector<8x16xf32>
    %cst_31 = arith.constant dense<0.000000e+00> : vector<8x256xf32>
    %42 = tpu.matmul %41, %39, %cst_31 {dimension_numbers = #tpu.dot_dimension_numbers<[1], [0], [0], [1], [0, 0, 1, 1], [], []>} : vector<8x16xf32>, vector<16x256xf32>, vector<8x256xf32> -> vector<8x256xf32>
    %43 = arith.addf %38, %42 : vector<8x256xf32>
    %c1_i32 = arith.constant 1 : i32
    %44 = tpu.dynamic_rotate %27 by %c1_i32 dim 1 : vector<16x256xf32>, i32 -> vector<16x256xf32>
    %c3 = arith.constant 3 : index
    %c0_32 = arith.constant 0 : index
    %c0_33 = arith.constant 0 : index
    %45 = vector.load %arg5[%c3, %c0_32, %c0_33] : memref<9x8x16xf32, #tpu.memory_space<vmem>>, vector<1x8x16xf32>
    %46 = vector.shape_cast %45 : vector<1x8x16xf32> to vector<8x16xf32>
    %cst_34 = arith.constant dense<0.000000e+00> : vector<8x256xf32>
    %47 = tpu.matmul %46, %44, %cst_34 {dimension_numbers = #tpu.dot_dimension_numbers<[1], [0], [0], [1], [0, 0, 1, 1], [], []>} : vector<8x16xf32>, vector<16x256xf32>, vector<8x256xf32> -> vector<8x256xf32>
    %c4_35 = arith.constant 4 : index
    %c0_36 = arith.constant 0 : index
    %c0_37 = arith.constant 0 : index
    %48 = vector.load %arg5[%c4_35, %c0_36, %c0_37] : memref<9x8x16xf32, #tpu.memory_space<vmem>>, vector<1x8x16xf32>
    %49 = vector.shape_cast %48 : vector<1x8x16xf32> to vector<8x16xf32>
    %cst_38 = arith.constant dense<0.000000e+00> : vector<8x256xf32>
    %50 = tpu.matmul %49, %24, %cst_38 {dimension_numbers = #tpu.dot_dimension_numbers<[1], [0], [0], [1], [0, 0, 1, 1], [], []>} : vector<8x16xf32>, vector<16x256xf32>, vector<8x256xf32> -> vector<8x256xf32>
    %51 = arith.addf %47, %50 : vector<8x256xf32>
    %c255_i32 = arith.constant 255 : i32
    %52 = tpu.dynamic_rotate %29 by %c255_i32 dim 1 : vector<16x256xf32>, i32 -> vector<16x256xf32>
    %c5 = arith.constant 5 : index
    %c0_39 = arith.constant 0 : index
    %c0_40 = arith.constant 0 : index
    %53 = vector.load %arg5[%c5, %c0_39, %c0_40] : memref<9x8x16xf32, #tpu.memory_space<vmem>>, vector<1x8x16xf32>
    %54 = vector.shape_cast %53 : vector<1x8x16xf32> to vector<8x16xf32>
    %cst_41 = arith.constant dense<0.000000e+00> : vector<8x256xf32>
    %55 = tpu.matmul %54, %52, %cst_41 {dimension_numbers = #tpu.dot_dimension_numbers<[1], [0], [0], [1], [0, 0, 1, 1], [], []>} : vector<8x16xf32>, vector<16x256xf32>, vector<8x256xf32> -> vector<8x256xf32>
    %56 = arith.addf %51, %55 : vector<8x256xf32>
    %c241_i32 = arith.constant 241 : i32
    %57 = tpu.dynamic_rotate %27 by %c241_i32 dim 1 : vector<16x256xf32>, i32 -> vector<16x256xf32>
    %c6 = arith.constant 6 : index
    %c0_42 = arith.constant 0 : index
    %c0_43 = arith.constant 0 : index
    %58 = vector.load %arg5[%c6, %c0_42, %c0_43] : memref<9x8x16xf32, #tpu.memory_space<vmem>>, vector<1x8x16xf32>
    %59 = vector.shape_cast %58 : vector<1x8x16xf32> to vector<8x16xf32>
    %cst_44 = arith.constant dense<0.000000e+00> : vector<8x256xf32>
    %60 = tpu.matmul %59, %57, %cst_44 {dimension_numbers = #tpu.dot_dimension_numbers<[1], [0], [0], [1], [0, 0, 1, 1], [], []>} : vector<8x16xf32>, vector<16x256xf32>, vector<8x256xf32> -> vector<8x256xf32>
    %c240_i32_45 = arith.constant 240 : i32
    %61 = tpu.dynamic_rotate %24 by %c240_i32_45 dim 1 : vector<16x256xf32>, i32 -> vector<16x256xf32>
    %c7 = arith.constant 7 : index
    %c0_46 = arith.constant 0 : index
    %c0_47 = arith.constant 0 : index
    %62 = vector.load %arg5[%c7, %c0_46, %c0_47] : memref<9x8x16xf32, #tpu.memory_space<vmem>>, vector<1x8x16xf32>
    %63 = vector.shape_cast %62 : vector<1x8x16xf32> to vector<8x16xf32>
    %cst_48 = arith.constant dense<0.000000e+00> : vector<8x256xf32>
    %64 = tpu.matmul %63, %61, %cst_48 {dimension_numbers = #tpu.dot_dimension_numbers<[1], [0], [0], [1], [0, 0, 1, 1], [], []>} : vector<8x16xf32>, vector<16x256xf32>, vector<8x256xf32> -> vector<8x256xf32>
    %65 = arith.addf %60, %64 : vector<8x256xf32>
    %c239_i32 = arith.constant 239 : i32
    %66 = tpu.dynamic_rotate %29 by %c239_i32 dim 1 : vector<16x256xf32>, i32 -> vector<16x256xf32>
    %c8_49 = arith.constant 8 : index
    %c0_50 = arith.constant 0 : index
    %c0_51 = arith.constant 0 : index
    %67 = vector.load %arg5[%c8_49, %c0_50, %c0_51] : memref<9x8x16xf32, #tpu.memory_space<vmem>>, vector<1x8x16xf32>
    %68 = vector.shape_cast %67 : vector<1x8x16xf32> to vector<8x16xf32>
    %cst_52 = arith.constant dense<0.000000e+00> : vector<8x256xf32>
    %69 = tpu.matmul %68, %66, %cst_52 {dimension_numbers = #tpu.dot_dimension_numbers<[1], [0], [0], [1], [0, 0, 1, 1], [], []>} : vector<8x16xf32>, vector<16x256xf32>, vector<8x256xf32> -> vector<8x256xf32>
    %70 = arith.addf %65, %69 : vector<8x256xf32>
    %71 = vector.broadcast %7 : vector<1x256xf32> to vector<8x256xf32>
    %72 = arith.mulf %43, %71 : vector<8x256xf32>
    %73 = arith.addf %72, %56 : vector<8x256xf32>
    %74 = vector.broadcast %11 : vector<1x256xf32> to vector<8x256xf32>
    %75 = arith.mulf %70, %74 : vector<8x256xf32>
    %76 = arith.addf %73, %75 : vector<8x256xf32>
    %77 = vector.broadcast %25 : vector<8x1xf32> to vector<8x256xf32>
    %78 = arith.addf %76, %77 : vector<8x256xf32>
    %cst_53 = arith.constant 0.000000e+00 : f32
    %79 = vector.broadcast %cst_53 : f32 to vector<8x256xf32>
    %80 = arith.maximumf %78, %79 : vector<8x256xf32>
    %c0_54 = arith.constant 0 : index
    %c0_55 = arith.constant 0 : index
    %81 = vector.load %arg8[%c0_54, %c0_55] : memref<8x1xf32, #tpu.memory_space<vmem>>, vector<8x1xf32>
    %82 = vector.broadcast %1 : vector<1x256xf32> to vector<8x256xf32>
    %83 = arith.mulf %80, %82 : vector<8x256xf32>
    %84 = vector.broadcast %2 : vector<1x256xf32> to vector<8x256xf32>
    %85 = arith.mulf %80, %84 : vector<8x256xf32>
    %c17_i32_56 = arith.constant 17 : i32
    %86 = tpu.dynamic_rotate %83 by %c17_i32_56 dim 1 : vector<8x256xf32>, i32 -> vector<8x256xf32>
    %c0_57 = arith.constant 0 : index
    %c0_58 = arith.constant 0 : index
    %c0_59 = arith.constant 0 : index
    %87 = vector.load %arg7[%c0_57, %c0_58, %c0_59] : memref<9x8x8xf32, #tpu.memory_space<vmem>>, vector<1x8x8xf32>
    %88 = vector.shape_cast %87 : vector<1x8x8xf32> to vector<8x8xf32>
    %cst_60 = arith.constant dense<0.000000e+00> : vector<8x256xf32>
    %89 = tpu.matmul %88, %86, %cst_60 {dimension_numbers = #tpu.dot_dimension_numbers<[1], [0], [0], [1], [0, 0, 1, 1], [], []>} : vector<8x8xf32>, vector<8x256xf32>, vector<8x256xf32> -> vector<8x256xf32>
    %c16_i32_61 = arith.constant 16 : i32
    %90 = tpu.dynamic_rotate %80 by %c16_i32_61 dim 1 : vector<8x256xf32>, i32 -> vector<8x256xf32>
    %c1_62 = arith.constant 1 : index
    %c0_63 = arith.constant 0 : index
    %c0_64 = arith.constant 0 : index
    %91 = vector.load %arg7[%c1_62, %c0_63, %c0_64] : memref<9x8x8xf32, #tpu.memory_space<vmem>>, vector<1x8x8xf32>
    %92 = vector.shape_cast %91 : vector<1x8x8xf32> to vector<8x8xf32>
    %cst_65 = arith.constant dense<0.000000e+00> : vector<8x256xf32>
    %93 = tpu.matmul %92, %90, %cst_65 {dimension_numbers = #tpu.dot_dimension_numbers<[1], [0], [0], [1], [0, 0, 1, 1], [], []>} : vector<8x8xf32>, vector<8x256xf32>, vector<8x256xf32> -> vector<8x256xf32>
    %94 = arith.addf %89, %93 : vector<8x256xf32>
    %c15_i32_66 = arith.constant 15 : i32
    %95 = tpu.dynamic_rotate %85 by %c15_i32_66 dim 1 : vector<8x256xf32>, i32 -> vector<8x256xf32>
    %c2_67 = arith.constant 2 : index
    %c0_68 = arith.constant 0 : index
    %c0_69 = arith.constant 0 : index
    %96 = vector.load %arg7[%c2_67, %c0_68, %c0_69] : memref<9x8x8xf32, #tpu.memory_space<vmem>>, vector<1x8x8xf32>
    %97 = vector.shape_cast %96 : vector<1x8x8xf32> to vector<8x8xf32>
    %cst_70 = arith.constant dense<0.000000e+00> : vector<8x256xf32>
    %98 = tpu.matmul %97, %95, %cst_70 {dimension_numbers = #tpu.dot_dimension_numbers<[1], [0], [0], [1], [0, 0, 1, 1], [], []>} : vector<8x8xf32>, vector<8x256xf32>, vector<8x256xf32> -> vector<8x256xf32>
    %99 = arith.addf %94, %98 : vector<8x256xf32>
    %c1_i32_71 = arith.constant 1 : i32
    %100 = tpu.dynamic_rotate %83 by %c1_i32_71 dim 1 : vector<8x256xf32>, i32 -> vector<8x256xf32>
    %c3_72 = arith.constant 3 : index
    %c0_73 = arith.constant 0 : index
    %c0_74 = arith.constant 0 : index
    %101 = vector.load %arg7[%c3_72, %c0_73, %c0_74] : memref<9x8x8xf32, #tpu.memory_space<vmem>>, vector<1x8x8xf32>
    %102 = vector.shape_cast %101 : vector<1x8x8xf32> to vector<8x8xf32>
    %cst_75 = arith.constant dense<0.000000e+00> : vector<8x256xf32>
    %103 = tpu.matmul %102, %100, %cst_75 {dimension_numbers = #tpu.dot_dimension_numbers<[1], [0], [0], [1], [0, 0, 1, 1], [], []>} : vector<8x8xf32>, vector<8x256xf32>, vector<8x256xf32> -> vector<8x256xf32>
    %c4_76 = arith.constant 4 : index
    %c0_77 = arith.constant 0 : index
    %c0_78 = arith.constant 0 : index
    %104 = vector.load %arg7[%c4_76, %c0_77, %c0_78] : memref<9x8x8xf32, #tpu.memory_space<vmem>>, vector<1x8x8xf32>
    %105 = vector.shape_cast %104 : vector<1x8x8xf32> to vector<8x8xf32>
    %cst_79 = arith.constant dense<0.000000e+00> : vector<8x256xf32>
    %106 = tpu.matmul %105, %80, %cst_79 {dimension_numbers = #tpu.dot_dimension_numbers<[1], [0], [0], [1], [0, 0, 1, 1], [], []>} : vector<8x8xf32>, vector<8x256xf32>, vector<8x256xf32> -> vector<8x256xf32>
    %107 = arith.addf %103, %106 : vector<8x256xf32>
    %c255_i32_80 = arith.constant 255 : i32
    %108 = tpu.dynamic_rotate %85 by %c255_i32_80 dim 1 : vector<8x256xf32>, i32 -> vector<8x256xf32>
    %c5_81 = arith.constant 5 : index
    %c0_82 = arith.constant 0 : index
    %c0_83 = arith.constant 0 : index
    %109 = vector.load %arg7[%c5_81, %c0_82, %c0_83] : memref<9x8x8xf32, #tpu.memory_space<vmem>>, vector<1x8x8xf32>
    %110 = vector.shape_cast %109 : vector<1x8x8xf32> to vector<8x8xf32>
    %cst_84 = arith.constant dense<0.000000e+00> : vector<8x256xf32>
    %111 = tpu.matmul %110, %108, %cst_84 {dimension_numbers = #tpu.dot_dimension_numbers<[1], [0], [0], [1], [0, 0, 1, 1], [], []>} : vector<8x8xf32>, vector<8x256xf32>, vector<8x256xf32> -> vector<8x256xf32>
    %112 = arith.addf %107, %111 : vector<8x256xf32>
    %c241_i32_85 = arith.constant 241 : i32
    %113 = tpu.dynamic_rotate %83 by %c241_i32_85 dim 1 : vector<8x256xf32>, i32 -> vector<8x256xf32>
    %c6_86 = arith.constant 6 : index
    %c0_87 = arith.constant 0 : index
    %c0_88 = arith.constant 0 : index
    %114 = vector.load %arg7[%c6_86, %c0_87, %c0_88] : memref<9x8x8xf32, #tpu.memory_space<vmem>>, vector<1x8x8xf32>
    %115 = vector.shape_cast %114 : vector<1x8x8xf32> to vector<8x8xf32>
    %cst_89 = arith.constant dense<0.000000e+00> : vector<8x256xf32>
    %116 = tpu.matmul %115, %113, %cst_89 {dimension_numbers = #tpu.dot_dimension_numbers<[1], [0], [0], [1], [0, 0, 1, 1], [], []>} : vector<8x8xf32>, vector<8x256xf32>, vector<8x256xf32> -> vector<8x256xf32>
    %c240_i32_90 = arith.constant 240 : i32
    %117 = tpu.dynamic_rotate %80 by %c240_i32_90 dim 1 : vector<8x256xf32>, i32 -> vector<8x256xf32>
    %c7_91 = arith.constant 7 : index
    %c0_92 = arith.constant 0 : index
    %c0_93 = arith.constant 0 : index
    %118 = vector.load %arg7[%c7_91, %c0_92, %c0_93] : memref<9x8x8xf32, #tpu.memory_space<vmem>>, vector<1x8x8xf32>
    %119 = vector.shape_cast %118 : vector<1x8x8xf32> to vector<8x8xf32>
    %cst_94 = arith.constant dense<0.000000e+00> : vector<8x256xf32>
    %120 = tpu.matmul %119, %117, %cst_94 {dimension_numbers = #tpu.dot_dimension_numbers<[1], [0], [0], [1], [0, 0, 1, 1], [], []>} : vector<8x8xf32>, vector<8x256xf32>, vector<8x256xf32> -> vector<8x256xf32>
    %121 = arith.addf %116, %120 : vector<8x256xf32>
    %c239_i32_95 = arith.constant 239 : i32
    %122 = tpu.dynamic_rotate %85 by %c239_i32_95 dim 1 : vector<8x256xf32>, i32 -> vector<8x256xf32>
    %c8_96 = arith.constant 8 : index
    %c0_97 = arith.constant 0 : index
    %c0_98 = arith.constant 0 : index
    %123 = vector.load %arg7[%c8_96, %c0_97, %c0_98] : memref<9x8x8xf32, #tpu.memory_space<vmem>>, vector<1x8x8xf32>
    %124 = vector.shape_cast %123 : vector<1x8x8xf32> to vector<8x8xf32>
    %cst_99 = arith.constant dense<0.000000e+00> : vector<8x256xf32>
    %125 = tpu.matmul %124, %122, %cst_99 {dimension_numbers = #tpu.dot_dimension_numbers<[1], [0], [0], [1], [0, 0, 1, 1], [], []>} : vector<8x8xf32>, vector<8x256xf32>, vector<8x256xf32> -> vector<8x256xf32>
    %126 = arith.addf %121, %125 : vector<8x256xf32>
    %127 = vector.broadcast %7 : vector<1x256xf32> to vector<8x256xf32>
    %128 = arith.mulf %99, %127 : vector<8x256xf32>
    %129 = arith.addf %128, %112 : vector<8x256xf32>
    %130 = vector.broadcast %11 : vector<1x256xf32> to vector<8x256xf32>
    %131 = arith.mulf %126, %130 : vector<8x256xf32>
    %132 = arith.addf %129, %131 : vector<8x256xf32>
    %133 = vector.broadcast %81 : vector<8x1xf32> to vector<8x256xf32>
    %134 = arith.addf %132, %133 : vector<8x256xf32>
    %cst_100 = arith.constant 0.000000e+00 : f32
    %135 = vector.broadcast %cst_100 : f32 to vector<8x256xf32>
    %136 = arith.maximumf %134, %135 : vector<8x256xf32>
    %c0_101 = arith.constant 0 : index
    %c0_102 = arith.constant 0 : index
    %c0_103 = arith.constant 0 : index
    %137 = vector.load %arg10[%c0_101, %c0_102, %c0_103] : memref<1x8x256xf32, #tpu.memory_space<vmem>>, vector<1x8x256xf32>
    %138 = vector.shape_cast %137 : vector<1x8x256xf32> to vector<8x256xf32>
    %139 = vector.shape_cast %136 : vector<8x256xf32> to vector<1x8x256xf32>
    tpu.vector_store %arg10[%c0_101, %c0_102, %c0_103], %139 {strides = array<i32>} : memref<1x8x256xf32, #tpu.memory_space<vmem>>, vector<1x8x256xf32>,
    return
  }
  func.func @transform_0(%arg0: i32) -> (i32, i32, i32) {
    %c0_i32 = arith.constant 0 : i32
    %c0_i32_0 = arith.constant 0 : i32
    %c0_i32_1 = arith.constant 0 : i32
    return %arg0, %c0_i32, %c0_i32_0 : i32, i32, i32
  }
  func.func @transform_1(%arg0: i32) -> (i32, i32, i32) {
    %c0_i32 = arith.constant 0 : i32
    %c0_i32_0 = arith.constant 0 : i32
    %c0_i32_1 = arith.constant 0 : i32
    return %arg0, %c0_i32, %c0_i32_0 : i32, i32, i32
  }
  func.func @transform_2(%arg0: i32) -> (i32, i32, i32) {
    %c0_i32 = arith.constant 0 : i32
    %c0_i32_0 = arith.constant 0 : i32
    %c0_i32_1 = arith.constant 0 : i32
    return %arg0, %c0_i32, %c0_i32_0 : i32, i32, i32
  }
  func.func @transform_3(%arg0: i32) -> (i32, i32, i32) {
    %c0_i32 = arith.constant 0 : i32
    %c0_i32_0 = arith.constant 0 : i32
    %c0_i32_1 = arith.constant 0 : i32
    return %arg0, %c0_i32, %c0_i32_0 : i32, i32, i32
  }
  func.func @transform_4(%arg0: i32) -> (i32, i32, i32) {
    %c0_i32 = arith.constant 0 : i32
    %c0_i32_0 = arith.constant 0 : i32
    %c0_i32_1 = arith.constant 0 : i32
    %c0_i32_2 = arith.constant 0 : i32
    return %c0_i32, %c0_i32_0, %c0_i32_1 : i32, i32, i32
  }
  func.func @transform_5(%arg0: i32) -> (i32, i32) {
    %c0_i32 = arith.constant 0 : i32
    %c0_i32_0 = arith.constant 0 : i32
    %c0_i32_1 = arith.constant 0 : i32
    return %c0_i32, %c0_i32_0 : i32, i32
  }
  func.func @transform_6(%arg0: i32) -> (i32, i32, i32) {
    %c0_i32 = arith.constant 0 : i32
    %c0_i32_0 = arith.constant 0 : i32
    %c0_i32_1 = arith.constant 0 : i32
    %c0_i32_2 = arith.constant 0 : i32
    return %c0_i32, %c0_i32_0, %c0_i32_1 : i32, i32, i32
  }
  func.func @transform_7(%arg0: i32) -> (i32, i32) {
    %c0_i32 = arith.constant 0 : i32
    %c0_i32_0 = arith.constant 0 : i32
    %c0_i32_1 = arith.constant 0 : i32
    return %c0_i32, %c0_i32_0 : i32, i32
  }
  func.func @transform_8(%arg0: i32) -> (i32, i32) {
    %c0_i32 = arith.constant 0 : i32
    %c0_i32_0 = arith.constant 0 : i32
    %c0_i32_1 = arith.constant 0 : i32
    return %c0_i32, %c0_i32_0 : i32, i32
  }
  func.func @transform_9(%arg0: i32) -> (i32, i32, i32) {
    %c0_i32 = arith.constant 0 : i32
    %c0_i32_0 = arith.constant 0 : i32
    %c0_i32_1 = arith.constant 0 : i32
    return %arg0, %c0_i32, %c0_i32_0 : i32, i32, i32
  }
}

</mosaic_0001>

<llo_original>
// kernel: tpu_custom_call.1
$region0: #{tpu_custom_call.1}
  #allocation0 [shape = 'u32[]', space=smem, size = 0x4, offset = 0x4, fixed_abs, tag = 'smem constant byte address 0x4 - core index']
  #allocation1 [shape = 'u32[144,128]{1,0:T(1,128)}', space=vmem, size = 0x12000, scoped, tag = 'internal scratch']
  #allocation2 [shape = 'f32[16,256]{1,0:T(8,128)}', space=vmem, size = 0x4000, scoped, tag = 'scratch operand']
  %s0 = inlined_call_operand.vmem [shape: f32[2,4,256], index: 0, kind: input, shape index: {}]
  %s1 = inlined_call_operand.vmem [shape: f32[2,4,256], index: 1, kind: input, shape index: {}]
  %s2 = inlined_call_operand.vmem [shape: f32[2,4,256], index: 2, kind: input, shape index: {}]
  %s3 = inlined_call_operand.vmem [shape: f32[2,4,256], index: 3, kind: input, shape index: {}]
  %s4 = inlined_call_operand.vmem [shape: f32[9,8,16], index: 4, kind: input, shape index: {}]
  %s5 = inlined_call_operand.vmem [shape: f32[8,1], index: 5, kind: input, shape index: {}]
  %s6 = inlined_call_operand.vmem [shape: f32[9,8,8], index: 6, kind: input, shape index: {}]
  %s7 = inlined_call_operand.vmem [shape: f32[8,1], index: 7, kind: input, shape index: {}]
  %s8 = inlined_call_operand.vmem [shape: f32[2,256], index: 8, kind: input, shape index: {}]
  %s9 = inlined_call_operand.hbm [shape: f32[2,8,256], index: 9, kind: output, shape index: {}]
  %s10 = sld [smem:[#allocation0]]
  $region69: #{tpu_custom_call.1} parent=0
    _
  %s12 = ssub.s32 1, %s10
  %s13 = scalar_select 0, %s12, %s10
  $region1: #{tpu_custom_call.1} parent=0
    #allocation3 [shape = 'u8[16384]{0}', space=vmem, size = 0x4000, scoped, tag = 'output window, operand 0']
    #allocation4 [shape = 's32[2]{0}', space=sflag, size = 0x8, scoped, tag = 'scoped memory for tpu_custom_call.1']
    %14 = vsyncpa [#allocation4], 0
    %s15 = scalar_lea.sflag [#allocation4], 1
    %16 = vsyncpa %s15, 0
    loop: start=0, step=1, limit=4
    $region2: #{tpu_custom_call.1} parent=1 // loop_pre_header
      _
    $region3: #{tpu_custom_call.1} parent=1 // loop_header
      %s18 = sphi 0, %s22
      %p19 = scmp.ge.s32.totalorder %s18, 4
      %s28 = sphi 0, %s30
      %s31 = sphi 0, %s28
      %s32 = sphi 0, %s31
      %s48 = sphi 0, %s32
      %s54 = sphi 0, %s56
      %s57 = sphi 0, %s54
      %s58 = sphi 0, %s57
      %s74 = sphi 0, %s58
      %s80 = sphi 0, %s82
      %s83 = sphi 0, %s80
      %s84 = sphi 0, %s83
      %s100 = sphi 0, %s84
      %s106 = sphi 0, %s108
      %s109 = sphi 0, %s106
      %s110 = sphi 0, %s109
      %s126 = sphi 0, %s110
      %s130 = sphi 0, %s130
      %s132 = sphi 0, %s130
      %s133 = sphi 0, %s132
      %s147 = sphi 0, %s133
      %s151 = sphi 0, %s151
      %s153 = sphi 0, %s151
      %s154 = sphi 0, %s153
      %s168 = sphi 0, %s154
      %s172 = sphi 0, %s172
      %s174 = sphi 0, %s172
      %s175 = sphi 0, %s174
      %s189 = sphi 0, %s175
      %s193 = sphi 0, %s193
      %s195 = sphi 0, %s193
      %s196 = sphi 0, %s195
      %s210 = sphi 0, %s196
      %s214 = sphi 0, %s214
      %s216 = sphi 0, %s214
      %s217 = sphi 0, %s216
      %s231 = sphi 0, %s217
      %s237 = sphi 0, %s239
      %s240 = sphi 0, %s237
      %s241 = sphi 0, %s240
      %s257 = sphi 0, %s241
    $region4: #{tpu_custom_call.1} parent=1 // loop_header_branch
      %21 = sbr.rel (%p19) target = $region8
    $region5: #{tpu_custom_call.1} parent=1 // loop_body
      %s23 = ssub.s32 %s18, 1
      %s24 = ssub.s32 %s18, 2
      %s25 = sadd.s32 %s18, 1
      %s26 = ssub.s32 %s18, %s25
      %p27 = scmp.eq.s32.totalorder %s26, 0
      %s29 = sadd.s32 %s28, 1
      %s30 = scalar_select %p27, %s28, %s29
      %p33 = pneg %p27
      %p34 = scmp.eq.s32.totalorder %s18, 1
      %p35 = por %p33, %p34
      %p36 = scmp.ne.s32.totalorder %s28, %s31
      %p37 = scmp.eq.s32.totalorder %s18, 0
      %p38 = por %p36, %p37
      %p39 = scmp.ne.s32.totalorder %s28, %s31
      %p40 = scmp.eq.s32.totalorder %s23, 1
      %p41 = por %p39, %p40
      %p42 = scmp.ne.s32.totalorder %s31, %s32
      %p43 = scmp.eq.s32.totalorder %s23, 0
      %p44 = por %p42, %p43
      %p45 = scmp.ne.s32.totalorder %s31, %s32
      %p46 = scmp.eq.s32.totalorder %s24, 1
      %p47 = por %p45, %p46
      %p49 = scmp.ne.s32.totalorder %s32, %s48
      %p50 = scmp.eq.s32.totalorder %s24, 0
      %p51 = por %p49, %p50
      %s52 = ssub.s32 %s18, %s25
      %p53 = scmp.eq.s32.totalorder %s52, 0
      %s55 = sadd.s32 %s54, 1
      %s56 = scalar_select %p53, %s54, %s55
      %p59 = pneg %p53
      %p60 = scmp.eq.s32.totalorder %s18, 1
      %p61 = por %p59, %p60
      %p62 = scmp.ne.s32.totalorder %s54, %s57
      %p63 = scmp.eq.s32.totalorder %s18, 0
      %p64 = por %p62, %p63
      %p65 = scmp.ne.s32.totalorder %s54, %s57
      %p66 = scmp.eq.s32.totalorder %s23, 1
      %p67 = por %p65, %p66
      %p68 = scmp.ne.s32.totalorder %s57, %s58
      %p69 = scmp.eq.s32.totalorder %s23, 0
      %p70 = por %p68, %p69
      %p71 = scmp.ne.s32.totalorder %s57, %s58
      %p72 = scmp.eq.s32.totalorder %s24, 1
      %p73 = por %p71, %p72
      %p75 = scmp.ne.s32.totalorder %s58, %s74
      %p76 = scmp.eq.s32.totalorder %s24, 0
      %p77 = por %p75, %p76
      %s78 = ssub.s32 %s18, %s25
      %p79 = scmp.eq.s32.totalorder %s78, 0
      %s81 = sadd.s32 %s80, 1
      %s82 = scalar_select %p79, %s80, %s81
      %p85 = pneg %p79
      %p86 = scmp.eq.s32.totalorder %s18, 1
      %p87 = por %p85, %p86
      %p88 = scmp.ne.s32.totalorder %s80, %s83
      %p89 = scmp.eq.s32.totalorder %s18, 0
      %p90 = por %p88, %p89
      %p91 = scmp.ne.s32.totalorder %s80, %s83
      %p92 = scmp.eq.s32.totalorder %s23, 1
      %p93 = por %p91, %p92
      %p94 = scmp.ne.s32.totalorder %s83, %s84
      %p95 = scmp.eq.s32.totalorder %s23, 0
      %p96 = por %p94, %p95
      %p97 = scmp.ne.s32.totalorder %s83, %s84
      %p98 = scmp.eq.s32.totalorder %s24, 1
      %p99 = por %p97, %p98
      %p101 = scmp.ne.s32.totalorder %s84, %s100
      %p102 = scmp.eq.s32.totalorder %s24, 0
      %p103 = por %p101, %p102
      %s104 = ssub.s32 %s18, %s25
      %p105 = scmp.eq.s32.totalorder %s104, 0
      %s107 = sadd.s32 %s106, 1
      %s108 = scalar_select %p105, %s106, %s107
      %p111 = pneg %p105
      %p112 = scmp.eq.s32.totalorder %s18, 1
      %p113 = por %p111, %p112
      %p114 = scmp.ne.s32.totalorder %s106, %s109
      %p115 = scmp.eq.s32.totalorder %s18, 0
      %p116 = por %p114, %p115
      %p117 = scmp.ne.s32.totalorder %s106, %s109
      %p118 = scmp.eq.s32.totalorder %s23, 1
      %p119 = por %p117, %p118
      %p120 = scmp.ne.s32.totalorder %s109, %s110
      %p121 = scmp.eq.s32.totalorder %s23, 0
      %p122 = por %p120, %p121
      %p123 = scmp.ne.s32.totalorder %s109, %s110
      %p124 = scmp.eq.s32.totalorder %s24, 1
      %p125 = por %p123, %p124
      %p127 = scmp.ne.s32.totalorder %s110, %s126
      %p128 = scmp.eq.s32.totalorder %s24, 0
      %p129 = por %p127, %p128
      %s131 = sadd.s32 %s130, 1
      %p134 = scmp.eq.s32.totalorder %s18, 1
      %p135 = scmp.ne.s32.totalorder %s130, %s132
      %p136 = scmp.eq.s32.totalorder %s18, 0
      %p137 = por %p135, %p136
      %p138 = scmp.ne.s32.totalorder %s130, %s132
      %p139 = scmp.eq.s32.totalorder %s23, 1
      %p140 = por %p138, %p139
      %p141 = scmp.ne.s32.totalorder %s132, %s133
      %p142 = scmp.eq.s32.totalorder %s23, 0
      %p143 = por %p141, %p142
      %p144 = scmp.ne.s32.totalorder %s132, %s133
      %p145 = scmp.eq.s32.totalorder %s24, 1
      %p146 = por %p144, %p145
      %p148 = scmp.ne.s32.totalorder %s133, %s147
      %p149 = scmp.eq.s32.totalorder %s24, 0
      %p150 = por %p148, %p149
      %s152 = sadd.s32 %s151, 1
      %p155 = scmp.eq.s32.totalorder %s18, 1
      %p156 = scmp.ne.s32.totalorder %s151, %s153
      %p157 = scmp.eq.s32.totalorder %s18, 0
      %p158 = por %p156, %p157
      %p159 = scmp.ne.s32.totalorder %s151, %s153
      %p160 = scmp.eq.s32.totalorder %s23, 1
      %p161 = por %p159, %p160
      %p162 = scmp.ne.s32.totalorder %s153, %s154
      %p163 = scmp.eq.s32.totalorder %s23, 0
      %p164 = por %p162, %p163
      %p165 = scmp.ne.s32.totalorder %s153, %s154
      %p166 = scmp.eq.s32.totalorder %s24, 1
      %p167 = por %p165, %p166
      %p169 = scmp.ne.s32.totalorder %s154, %s168
      %p170 = scmp.eq.s32.totalorder %s24, 0
      %p171 = por %p169, %p170
      %s173 = sadd.s32 %s172, 1
      %p176 = scmp.eq.s32.totalorder %s18, 1
      %p177 = scmp.ne.s32.totalorder %s172, %s174
      %p178 = scmp.eq.s32.totalorder %s18, 0
      %p179 = por %p177, %p178
      %p180 = scmp.ne.s32.totalorder %s172, %s174
      %p181 = scmp.eq.s32.totalorder %s23, 1
      %p182 = por %p180, %p181
      %p183 = scmp.ne.s32.totalorder %s174, %s175
      %p184 = scmp.eq.s32.totalorder %s23, 0
      %p185 = por %p183, %p184
      %p186 = scmp.ne.s32.totalorder %s174, %s175
      %p187 = scmp.eq.s32.totalorder %s24, 1
      %p188 = por %p186, %p187
      %p190 = scmp.ne.s32.totalorder %s175, %s189
      %p191 = scmp.eq.s32.totalorder %s24, 0
      %p192 = por %p190, %p191
      %s194 = sadd.s32 %s193, 1
      %p197 = scmp.eq.s32.totalorder %s18, 1
      %p198 = scmp.ne.s32.totalorder %s193, %s195
      %p199 = scmp.eq.s32.totalorder %s18, 0
      %p200 = por %p198, %p199
      %p201 = scmp.ne.s32.totalorder %s193, %s195
      %p202 = scmp.eq.s32.totalorder %s23, 1
      %p203 = por %p201, %p202
      %p204 = scmp.ne.s32.totalorder %s195, %s196
      %p205 = scmp.eq.s32.totalorder %s23, 0
      %p206 = por %p204, %p205
      %p207 = scmp.ne.s32.totalorder %s195, %s196
      %p208 = scmp.eq.s32.totalorder %s24, 1
      %p209 = por %p207, %p208
      %p211 = scmp.ne.s32.totalorder %s196, %s210
      %p212 = scmp.eq.s32.totalorder %s24, 0
      %p213 = por %p211, %p212
      %s215 = sadd.s32 %s214, 1
      %p218 = scmp.eq.s32.totalorder %s18, 1
      %p219 = scmp.ne.s32.totalorder %s214, %s216
      %p220 = scmp.eq.s32.totalorder %s18, 0
      %p221 = por %p219, %p220
      %p222 = scmp.ne.s32.totalorder %s214, %s216
      %p223 = scmp.eq.s32.totalorder %s23, 1
      %p224 = por %p222, %p223
      %p225 = scmp.ne.s32.totalorder %s216, %s217
      %p226 = scmp.eq.s32.totalorder %s23, 0
      %p227 = por %p225, %p226
      %p228 = scmp.ne.s32.totalorder %s216, %s217
      %p229 = scmp.eq.s32.totalorder %s24, 1
      %p230 = por %p228, %p229
      %p232 = scmp.ne.s32.totalorder %s217, %s231
      %p233 = scmp.eq.s32.totalorder %s24, 0
      %p234 = por %p232, %p233
      %s235 = ssub.s32 %s18, %s25
      %p236 = scmp.eq.s32.totalorder %s235, 0
      %s238 = sadd.s32 %s237, 1
      %s239 = scalar_select %p236, %s237, %s238
      %p242 = pneg %p236
      %p243 = scmp.eq.s32.totalorder %s18, 1
      %p244 = por %p242, %p243
      %p245 = scmp.ne.s32.totalorder %s237, %s240
      %p246 = scmp.eq.s32.totalorder %s18, 0
      %p247 = por %p245, %p246
      %p248 = scmp.ne.s32.totalorder %s237, %s240
      %p249 = scmp.eq.s32.totalorder %s23, 1
      %p250 = por %p248, %p249
      %p251 = scmp.ne.s32.totalorder %s240, %s241
      %p252 = scmp.eq.s32.totalorder %s23, 0
      %p253 = por %p251, %p252
      %p254 = scmp.ne.s32.totalorder %s240, %s241
      %p255 = scmp.eq.s32.totalorder %s24, 1
      %p256 = por %p254, %p255
      %p258 = scmp.ne.s32.totalorder %s241, %s257
      %p259 = scmp.eq.s32.totalorder %s24, 0
      %p260 = por %p258, %p259
      %p261 = scmp.le.s32.totalorder 1, %s18
      %p262 = scmp.lt.s32.totalorder %s18, 3
      %p263 = pnand %p261, %p262
      %p264 = pneg %p263
      // Predicated region
      $region9: #{tpu_custom_call.1} parent=5 // pred_check
        _
      $region10: #{tpu_custom_call.1} parent=5 // pred_check_branch
        %266 = sbr.rel (%p263) target = $region12
      $region11: #{tpu_custom_call.1} parent=5 // pred_region
        %s267 = ssub.s32 %s18, 1
        // Predicated region
        $region13: #{tpu_custom_call.1} parent=11 // pred_check
          %p268 = pneg %p143
        $region14: #{tpu_custom_call.1} parent=11 // pred_check_branch
          %270 = sbr.rel (%p268) target = $region16
        $region15: #{tpu_custom_call.1} parent=11 // pred_region
          _
        $region16: #{tpu_custom_call.1} parent=11 // pred_fallthru
          _
        // Predicated region
        $region17: #{tpu_custom_call.1} parent=11 // pred_check
          %p271 = pneg %p164
        $region18: #{tpu_custom_call.1} parent=11 // pred_check_branch
          %273 = sbr.rel (%p271) target = $region20
        $region19: #{tpu_custom_call.1} parent=11 // pred_region
          _
        $region20: #{tpu_custom_call.1} parent=11 // pred_fallthru
          _
        // Predicated region
        $region21: #{tpu_custom_call.1} parent=11 // pred_check
          %p274 = pneg %p185
        $region22: #{tpu_custom_call.1} parent=11 // pred_check_branch
          %276 = sbr.rel (%p274) target = $region24
        $region23: #{tpu_custom_call.1} parent=11 // pred_region
          _
        $region24: #{tpu_custom_call.1} parent=11 // pred_fallthru
          _
        // Predicated region
        $region25: #{tpu_custom_call.1} parent=11 // pred_check
          %p277 = pneg %p206
        $region26: #{tpu_custom_call.1} parent=11 // pred_check_branch
          %279 = sbr.rel (%p277) target = $region28
        $region27: #{tpu_custom_call.1} parent=11 // pred_region
          _
        $region28: #{tpu_custom_call.1} parent=11 // pred_fallthru
          _
        // Predicated region
        $region29: #{tpu_custom_call.1} parent=11 // pred_check
          %p280 = pneg %p227
        $region30: #{tpu_custom_call.1} parent=11 // pred_check_branch
          %282 = sbr.rel (%p280) target = $region32
        $region31: #{tpu_custom_call.1} parent=11 // pred_region
          _
        $region32: #{tpu_custom_call.1} parent=11 // pred_fallthru
          _
      $region12: #{tpu_custom_call.1} parent=5 // pred_fallthru
        _
      %p283 = scmp.lt.s32.totalorder %s18, 2
      // Predicated region
      $region33: #{tpu_custom_call.1} parent=5 // pred_check
        %p284 = pneg %p283
      $region34: #{tpu_custom_call.1} parent=5 // pred_check_branch
        %286 = sbr.rel (%p284) target = $region36
      $region35: #{tpu_custom_call.1} parent=5 // pred_region
        // Predicated region
        $region37: #{tpu_custom_call.1} parent=35 // pred_check
          %p287 = pneg %p38
        $region38: #{tpu_custom_call.1} parent=35 // pred_check_branch
          %289 = sbr.rel (%p287) target = $region40
        $region39: #{tpu_custom_call.1} parent=35 // pred_region
          %p290 = scmp.lt.s32.totalorder %s18, 1
          %s291 = scalar_select %p290, %s18, 1
          %s292 = smul.addr %s291, 2
          %s293 = smul.addr %s292, 4
          %s294 = scalar_lea.vmem %s0, %s293
        $region40: #{tpu_custom_call.1} parent=35 // pred_fallthru
          _
        // Predicated region
        $region41: #{tpu_custom_call.1} parent=35 // pred_check
          %p295 = pneg %p64
        $region42: #{tpu_custom_call.1} parent=35 // pred_check_branch
          %297 = sbr.rel (%p295) target = $region44
        $region43: #{tpu_custom_call.1} parent=35 // pred_region
          %p298 = scmp.lt.s32.totalorder %s18, 1
          %s299 = scalar_select %p298, %s18, 1
          %s300 = smul.addr %s299, 2
          %s301 = smul.addr %s300, 4
          %s302 = scalar_lea.vmem %s1, %s301
        $region44: #{tpu_custom_call.1} parent=35 // pred_fallthru
          _
        // Predicated region
        $region45: #{tpu_custom_call.1} parent=35 // pred_check
          %p303 = pneg %p90
        $region46: #{tpu_custom_call.1} parent=35 // pred_check_branch
          %305 = sbr.rel (%p303) target = $region48
        $region47: #{tpu_custom_call.1} parent=35 // pred_region
          %p306 = scmp.lt.s32.totalorder %s18, 1
          %s307 = scalar_select %p306, %s18, 1
          %s308 = smul.addr %s307, 2
          %s309 = smul.addr %s308, 4
          %s310 = scalar_lea.vmem %s2, %s309
        $region48: #{tpu_custom_call.1} parent=35 // pred_fallthru
          _
        // Predicated region
        $region49: #{tpu_custom_call.1} parent=35 // pred_check
          %p311 = pneg %p116
        $region50: #{tpu_custom_call.1} parent=35 // pred_check_branch
          %313 = sbr.rel (%p311) target = $region52
        $region51: #{tpu_custom_call.1} parent=35 // pred_region
          %p314 = scmp.lt.s32.totalorder %s18, 1
          %s315 = scalar_select %p314, %s18, 1
          %s316 = smul.addr %s315, 2
          %s317 = smul.addr %s316, 4
          %s318 = scalar_lea.vmem %s3, %s317
        $region52: #{tpu_custom_call.1} parent=35 // pred_fallthru
          _
      $region36: #{tpu_custom_call.1} parent=5 // pred_fallthru
        _
      %p319 = scmp.le.s32.totalorder 1, %s18
      %p320 = scmp.lt.s32.totalorder %s18, 3
      %p321 = pnand %p319, %p320
      %p322 = pneg %p321
      // Predicated region
      $region53: #{tpu_custom_call.1} parent=5 // pred_check
        _
      $region54: #{tpu_custom_call.1} parent=5 // pred_check_branch
        %324 = sbr.rel (%p321) target = $region56
      $region55: #{tpu_custom_call.1} parent=5 // pred_region
        %s325 = ssub.s32 %s18, 1
        %p326 = scmp.lt.s32.totalorder %s23, 1
        %s327 = scalar_select %p326, %s23, 1
        %s328 = smul.addr %s327, 2
        %s329 = smul.addr %s328, 4
        %s330 = scalar_lea.vmem %s0, %s329
        %p331 = pneg %p44
        %p332 = pneg %p41
        %p333 = scmp.lt.s32.totalorder %s23, 1
        %s334 = scalar_select %p333, %s23, 1
        %s335 = smul.addr %s334, 2
        %s336 = smul.addr %s335, 4
        %s337 = scalar_lea.vmem %s1, %s336
        %p338 = pneg %p70
        %p339 = pneg %p67
        %p340 = scmp.lt.s32.totalorder %s23, 1
        %s341 = scalar_select %p340, %s23, 1
        %s342 = smul.addr %s341, 2
        %s343 = smul.addr %s342, 4
        %s344 = scalar_lea.vmem %s2, %s343
        %p345 = pneg %p96
        %p346 = pneg %p93
        %p347 = scmp.lt.s32.totalorder %s23, 1
        %s348 = scalar_select %p347, %s23, 1
        %s349 = smul.addr %s348, 2
        %s350 = smul.addr %s349, 4
        %s351 = scalar_lea.vmem %s3, %s350
        %p352 = pneg %p122
        %p353 = pneg %p119
        %p354 = pneg %p143
        %p355 = pneg %p140
        %p356 = pneg %p164
        %p357 = pneg %p161
        %p358 = pneg %p185
        %p359 = pneg %p182
        %p360 = pneg %p206
        %p361 = pneg %p203
        %p362 = pneg %p227
        %p363 = pneg %p224
        %p364 = pneg %p253
        %p365 = pneg %p250
        %s366 = sand.u32 %s240, 1
        %s367 = scalar_lea.sflag [#allocation4], %s366
        %s368 = sand.u32 %s240, 1
        %s369 = smul.addr %s368, 16
        %s370 = scalar_lea.vmem [#allocation3], %s369
        %p371 = scmp.lt.s32.totalorder %s23, 1
        %s372 = scalar_select %p371, %s23, 1
        %s373 = smul.addr %s372, 2
        %s374 = smul.addr %s373, 4
        %s375 = scalar_lea.vmem %s0, %s374
        %p376 = scmp.lt.s32.totalorder %s23, 1
        %s377 = scalar_select %p376, %s23, 1
        %s378 = smul.addr %s377, 2
        %s379 = smul.addr %s378, 4
        %s380 = scalar_lea.vmem %s1, %s379
        %p381 = scmp.lt.s32.totalorder %s23, 1
        %s382 = scalar_select %p381, %s23, 1
        %s383 = smul.addr %s382, 2
        %s384 = smul.addr %s383, 4
        %s385 = scalar_lea.vmem %s2, %s384
        %p386 = scmp.lt.s32.totalorder %s23, 1
        %s387 = scalar_select %p386, %s23, 1
        %s388 = smul.addr %s387, 2
        %s389 = smul.addr %s388, 4
        %s390 = scalar_lea.vmem %s3, %s389
        %v391 = vld [vmem:[%s8] sm:$0xf]
        %v392 = vlaneseq
        %v393 = vand.u32 %v392, 127
        %v394 = vadd.s32 %v393, 128
        %vm395 = vcmp.ge.s32.totalorder %v393, 16
        %vm396 = vcmp.ge.s32.totalorder %v394, 16
        %v397 = vsel %vm395, 1, 0
        %v398 = vsel %vm396, 1, 0
        %v399 = vcvt.s32.f32 %v397
        %v400 = vcvt.s32.f32 %v398
        %vm401 = vcmp.lt.s32.totalorder %v393, 240
        %vm402 = vcmp.lt.s32.totalorder %v394, 240
        %v403 = vsel %vm401, 1, 0
        %v404 = vsel %vm402, 1, 0
        %v405 = vcvt.s32.f32 %v403
        %v406 = vcvt.s32.f32 %v404
        %v407 = vld [vmem:[%s375] sm:$0xff]
        %v409 = vcombine.high %v407, %v407
        %411 = vst [vmem:[#allocation2] sm:$0xf] %v407
        %412 = vst [vmem:[#allocation2 + $0x8] sm:$0xf] %v409
        %v413 = vld [vmem:[%s380] sm:$0xff]
        %v415 = vcombine.low %v413, %v413
        %417 = vst [vmem:[#allocation2] sm:$0xf0] %v415
        %418 = vst [vmem:[#allocation2 + $0x8] sm:$0xf0] %v413
        %v419 = vld [vmem:[%s385] sm:$0xff]
        %v421 = vcombine.high %v419, %v419
        %423 = vst [vmem:[#allocation2 + $0x10] sm:$0xf] %v419
        %424 = vst [vmem:[#allocation2 + $0x18] sm:$0xf] %v421
        %v425 = vld [vmem:[%s390] sm:$0xff]
        %v427 = vcombine.low %v425, %v425
        %429 = vst [vmem:[#allocation2 + $0x10] sm:$0xf0] %v427
        %430 = vst [vmem:[#allocation2 + $0x18] sm:$0xf0] %v425
        %v431 = vld [vmem:[#allocation2] sm:$0xff]
        %v432 = vld [vmem:[#allocation2 + $0x8] sm:$0xff]
        %v433 = vld [vmem:[#allocation2 + $0x10] sm:$0xff]
        %v434 = vld [vmem:[#allocation2 + $0x18] sm:$0xff]
        %v435 = vld [vmem:[%s5] sm:$0xff]
        %v437 = vlaneseq
        %v438 = vshrl.u32 %v437, 7
        %v439 = vsub.s32 0, %v438
        %v440 = vrot.slane %v391, %v439
        %v441 = vlaneseq
        %v442 = vshrl.u32 %v441, 7
        %v443 = vsub.s32 2, %v442
        %v444 = vrot.slane %v391, %v443
        %v447 = vlaneseq
        %v448 = vshrl.u32 %v447, 7
        %v449 = vsub.s32 0, %v448
        %v450 = vrot.slane %v440, %v449
        %v451 = vlaneseq
        %v452 = vshrl.u32 %v451, 7
        %v453 = vsub.s32 0, %v452
        %v454 = vrot.slane %v444, %v453
        %v455 = vmul.f32 %v431, %v450
        %v456 = vmul.f32 %v432, %v454
        %v457 = vmul.f32 %v433, %v450
        %v458 = vmul.f32 %v434, %v454
        %v459 = vlaneseq
        %v460 = vshrl.u32 %v459, 7
        %v461 = vsub.s32 1, %v460
        %v462 = vrot.slane %v391, %v461
        %v463 = vlaneseq
        %v464 = vshrl.u32 %v463, 7
        %v465 = vsub.s32 3, %v464
        %v466 = vrot.slane %v391, %v465
        %v469 = vlaneseq
        %v470 = vshrl.u32 %v469, 7
        %v471 = vsub.s32 1, %v470
        %v472 = vrot.slane %v462, %v471
        %v473 = vlaneseq
        %v474 = vshrl.u32 %v473, 7
        %v475 = vsub.s32 1, %v474
        %v476 = vrot.slane %v466, %v475
        %v477 = vmul.f32 %v431, %v472
        %v478 = vmul.f32 %v432, %v476
        %v479 = vmul.f32 %v433, %v472
        %v480 = vmul.f32 %v434, %v476
        %481 = vrot.lane.b32.xlu0 %v455, 17
        %v482 = vpop.permute.xlu0 %481
        %483 = vrot.lane.b32.xlu0 %v457, 17
        %v484 = vpop.permute.xlu0 %483
        %485 = vrot.lane.b32.xlu0 %v456, 17
        %v486 = vpop.permute.xlu0 %485
        %487 = vrot.lane.b32.xlu0 %v458, 17
        %v488 = vpop.permute.xlu0 %487
        %vm489 = vcmp.lt.s32.totalorder %v393, 17
        %v490 = vsel %vm489, %v482, %v486
        %v491 = vsel %vm489, %v484, %v488
        %v492 = vsel %vm489, %v486, %v482
        %v493 = vsel %vm489, %v488, %v484
        %v494 = vld [vmem:[%s4] sm:$0xff]
        %495 = vrot.lane.b32.xlu0 %v431, 16
        %v496 = vpop.permute.xlu0 %495
        %497 = vrot.lane.b32.xlu0 %v433, 16
        %v498 = vpop.permute.xlu0 %497
        %499 = vrot.lane.b32.xlu0 %v432, 16
        %v500 = vpop.permute.xlu0 %499
        %501 = vrot.lane.b32.xlu0 %v434, 16
        %v502 = vpop.permute.xlu0 %501
        %vm503 = vcmp.lt.s32.totalorder %v393, 16
        %v504 = vsel %vm503, %v496, %v500
        %v505 = vsel %vm503, %v498, %v502
        %v506 = vsel %vm503, %v500, %v496
        %v507 = vsel %vm503, %v502, %v498
        %s508 = scalar_lea.vmem %s4, 8
        %v509 = vld [vmem:[%s508] sm:$0xff]
        %vm510 = vcmask 130048
        %v512 = vsel %vm510, %v509, 0
        %514 = vmatprep.subr.mxu0 %v504
        %515 = vmatpush1.msra.mxu0 %v506
        %516 = vmatprep.subr.mxu0 %v505
        %517 = vmatpush1.msra.mxu0 %v507
        %518 = vmatprep.subr.mxu0 0.0
        %519 = vmatpush1.msra.mxu0 0.0
        %520 = vmatprep.subr.mxu0 0.0
        %521 = vmatpush1.msra.mxu0 0.0
        %522 = vmatprep.subr.mxu0 0.0
        %523 = vmatpush1.msra.mxu0 0.0
        %524 = vmatprep.subr.mxu0 0.0
        %525 = vmatpush1.msra.mxu0 0.0
        %526 = vmatprep.subr.mxu0 0.0
        %527 = vmatpush1.msra.mxu0 0.0
        %528 = vmatprep.subr.mxu0 0.0
        %529 = vmatpush1.msra.mxu0 0.0
        %530 = vmatprep.subr.mxu0 0.0
        %531 = vmatpush1.msra.mxu0 0.0
        %532 = vmatprep.subr.mxu0 0.0
        %533 = vmatpush1.msra.mxu0 0.0
        %534 = vmatprep.subr.mxu0 0.0
        %535 = vmatpush1.msra.mxu0 0.0
        %536 = vmatprep.subr.mxu0 0.0
        %537 = vmatpush1.msra.mxu0 0.0
        %538 = vmatprep.subr.mxu0 0.0
        %539 = vmatpush1.msra.mxu0 0.0
        %540 = vmatprep.subr.mxu0 0.0
        %541 = vmatpush1.msra.mxu0 0.0
        %542 = vmatprep.subr.mxu0 0.0
        %543 = vmatpush1.msra.mxu0 0.0
        %544 = vmatprep.subr.mxu0 0.0
        %545 = vmatpush1.msra.mxu0 0.0
        %546 = vmatprep.subr.mxu0 0.0
        %547 = vmatpush1.msra.mxu0 0.0
        %548 = vmatprep.subr.mxu0 0.0
        %549 = vmatpush1.msra.mxu0 0.0
        %550 = vmatprep.subr.mxu0 0.0
        %551 = vmatpush1.msra.mxu0 0.0
        %552 = vmatprep.subr.mxu0 0.0
        %553 = vmatpush1.msra.mxu0 0.0
        %554 = vmatprep.subr.mxu0 0.0
        %555 = vmatpush1.msra.mxu0 0.0
        %556 = vmatprep.subr.mxu0 0.0
        %557 = vmatpush1.msra.mxu0 0.0
        %558 = vmatprep.subr.mxu0 0.0
        %559 = vmatpush1.msra.mxu0 0.0
        %560 = vmatprep.subr.mxu0 0.0
        %561 = vmatpush1.msra.mxu0 0.0
        %562 = vmatprep.subr.mxu0 0.0
        %563 = vmatpush1.msra.mxu0 0.0
        %564 = vmatprep.subr.mxu0 0.0
        %565 = vmatpush1.msra.mxu0 0.0
        %566 = vmatprep.subr.mxu0 0.0
        %567 = vmatpush1.msra.mxu0 0.0
        %568 = vmatprep.subr.mxu0 0.0
        %569 = vmatpush1.msra.mxu0 0.0
        %570 = vmatprep.subr.mxu0 0.0
        %571 = vmatpush1.msra.mxu0 0.0
        %572 = vmatprep.subr.mxu0 0.0
        %573 = vmatpush1.msra.mxu0 0.0
        %574 = vmatprep.subr.mxu0 0.0
        %575 = vmatpush1.msra.mxu0 0.0
        %576 = vmatprep.subr.mxu0 0.0
        %577 = vmatpush1.msra.mxu0 0.0
        %578 = vmatprep.mubr.f32.mxu0 0.0
        %579 = vmatmul.mubr.f32.gmra.mrb[0].mxu0 %v512
        %v580 = vpop.f32.mrb[0].mxu0
        %v581 = vadd.f32 0.0, %v580
        %v582 = vpop.f32.mrb[0].mxu0
        %v583 = vadd.f32 0.0, %v582
        %584 = vdwg.mxu0
        %v586 = vsel %vm510, %v494, 0
        %588 = vmatprep.subr.mxu0 %v490
        %589 = vmatpush1.msra.mxu0 %v492
        %590 = vmatprep.subr.mxu0 %v491
        %591 = vmatpush1.msra.mxu0 %v493
        %592 = vmatprep.subr.mxu0 0.0
        %593 = vmatpush1.msra.mxu0 0.0
        %594 = vmatprep.subr.mxu0 0.0
        %595 = vmatpush1.msra.mxu0 0.0
        %596 = vmatprep.subr.mxu0 0.0
        %597 = vmatpush1.msra.mxu0 0.0
        %598 = vmatprep.subr.mxu0 0.0
        %599 = vmatpush1.msra.mxu0 0.0
        %600 = vmatprep.subr.mxu0 0.0
        %601 = vmatpush1.msra.mxu0 0.0
        %602 = vmatprep.subr.mxu0 0.0
        %603 = vmatpush1.msra.mxu0 0.0
        %604 = vmatprep.subr.mxu0 0.0
        %605 = vmatpush1.msra.mxu0 0.0
        %606 = vmatprep.subr.mxu0 0.0
        %607 = vmatpush1.msra.mxu0 0.0
        %608 = vmatprep.subr.mxu0 0.0
        %609 = vmatpush1.msra.mxu0 0.0
        %610 = vmatprep.subr.mxu0 0.0
        %611 = vmatpush1.msra.mxu0 0.0
        %612 = vmatprep.subr.mxu0 0.0
        %613 = vmatpush1.msra.mxu0 0.0
        %614 = vmatprep.subr.mxu0 0.0
        %615 = vmatpush1.msra.mxu0 0.0
        %616 = vmatprep.subr.mxu0 0.0
        %617 = vmatpush1.msra.mxu0 0.0
        %618 = vmatprep.subr.mxu0 0.0
        %619 = vmatpush1.msra.mxu0 0.0
        %620 = vmatprep.subr.mxu0 0.0
        %621 = vmatpush1.msra.mxu0 0.0
        %622 = vmatprep.subr.mxu0 0.0
        %623 = vmatpush1.msra.mxu0 0.0
        %624 = vmatprep.subr.mxu0 0.0
        %625 = vmatpush1.msra.mxu0 0.0
        %626 = vmatprep.subr.mxu0 0.0
        %627 = vmatpush1.msra.mxu0 0.0
        %628 = vmatprep.subr.mxu0 0.0
        %629 = vmatpush1.msra.mxu0 0.0
        %630 = vmatprep.subr.mxu0 0.0
        %631 = vmatpush1.msra.mxu0 0.0
        %632 = vmatprep.subr.mxu0 0.0
        %633 = vmatpush1.msra.mxu0 0.0
        %634 = vmatprep.subr.mxu0 0.0
        %635 = vmatpush1.msra.mxu0 0.0
        %636 = vmatprep.subr.mxu0 0.0
        %637 = vmatpush1.msra.mxu0 0.0
        %638 = vmatprep.subr.mxu0 0.0
        %639 = vmatpush1.msra.mxu0 0.0
        %640 = vmatprep.subr.mxu0 0.0
        %641 = vmatpush1.msra.mxu0 0.0
        %642 = vmatprep.subr.mxu0 0.0
        %643 = vmatpush1.msra.mxu0 0.0
        %644 = vmatprep.subr.mxu0 0.0
        %645 = vmatpush1.msra.mxu0 0.0
        %646 = vmatprep.subr.mxu0 0.0
        %647 = vmatpush1.msra.mxu0 0.0
        %648 = vmatprep.subr.mxu0 0.0
        %649 = vmatpush1.msra.mxu0 0.0
        %650 = vmatprep.subr.mxu0 0.0
        %651 = vmatpush1.msra.mxu0 0.0
        %652 = vmatprep.mubr.f32.mxu0 0.0
        %653 = vmatmul.mubr.f32.gmra.mrb[0].mxu0 %v586
        %v654 = vpop.f32.mrb[0].mxu0
        %v655 = vadd.f32 %v581, %v654
        %v656 = vpop.f32.mrb[0].mxu0
        %v657 = vadd.f32 %v583, %v656
        %658 = vdwg.mxu0
        %659 = vrot.lane.b32.xlu0 %v477, 15
        %v660 = vpop.permute.xlu0 %659
        %661 = vrot.lane.b32.xlu0 %v479, 15
        %v662 = vpop.permute.xlu0 %661
        %663 = vrot.lane.b32.xlu0 %v478, 15
        %v664 = vpop.permute.xlu0 %663
        %665 = vrot.lane.b32.xlu0 %v480, 15
        %v666 = vpop.permute.xlu0 %665
        %vm667 = vcmp.lt.s32.totalorder %v393, 15
        %v668 = vsel %vm667, %v660, %v664
        %v669 = vsel %vm667, %v662, %v666
        %v670 = vsel %vm667, %v664, %v660
        %v671 = vsel %vm667, %v666, %v662
        %s672 = scalar_lea.vmem %s4, 16
        %v673 = vld [vmem:[%s672] sm:$0xff]
        %v675 = vsel %vm510, %v673, 0
        %677 = vmatprep.subr.mxu0 %v668
        %678 = vmatpush1.msra.mxu0 %v670
        %679 = vmatprep.subr.mxu0 %v669
        %680 = vmatpush1.msra.mxu0 %v671
        %681 = vmatprep.subr.mxu0 0.0
        %682 = vmatpush1.msra.mxu0 0.0
        %683 = vmatprep.subr.mxu0 0.0
        %684 = vmatpush1.msra.mxu0 0.0
        %685 = vmatprep.subr.mxu0 0.0
        %686 = vmatpush1.msra.mxu0 0.0
        %687 = vmatprep.subr.mxu0 0.0
        %688 = vmatpush1.msra.mxu0 0.0
        %689 = vmatprep.subr.mxu0 0.0
        %690 = vmatpush1.msra.mxu0 0.0
        %691 = vmatprep.subr.mxu0 0.0
        %692 = vmatpush1.msra.mxu0 0.0
        %693 = vmatprep.subr.mxu0 0.0
        %694 = vmatpush1.msra.mxu0 0.0
        %695 = vmatprep.subr.mxu0 0.0
        %696 = vmatpush1.msra.mxu0 0.0
        %697 = vmatprep.subr.mxu0 0.0
        %698 = vmatpush1.msra.mxu0 0.0
        %699 = vmatprep.subr.mxu0 0.0
        %700 = vmatpush1.msra.mxu0 0.0
        %701 = vmatprep.subr.mxu0 0.0
        %702 = vmatpush1.msra.mxu0 0.0
        %703 = vmatprep.subr.mxu0 0.0
        %704 = vmatpush1.msra.mxu0 0.0
        %705 = vmatprep.subr.mxu0 0.0
        %706 = vmatpush1.msra.mxu0 0.0
        %707 = vmatprep.subr.mxu0 0.0
        %708 = vmatpush1.msra.mxu0 0.0
        %709 = vmatprep.subr.mxu0 0.0
        %710 = vmatpush1.msra.mxu0 0.0
        %711 = vmatprep.subr.mxu0 0.0
        %712 = vmatpush1.msra.mxu0 0.0
        %713 = vmatprep.subr.mxu0 0.0
        %714 = vmatpush1.msra.mxu0 0.0
        %715 = vmatprep.subr.mxu0 0.0
        %716 = vmatpush1.msra.mxu0 0.0
        %717 = vmatprep.subr.mxu0 0.0
        %718 = vmatpush1.msra.mxu0 0.0
        %719 = vmatprep.subr.mxu0 0.0
        %720 = vmatpush1.msra.mxu0 0.0
        %721 = vmatprep.subr.mxu0 0.0
        %722 = vmatpush1.msra.mxu0 0.0
        %723 = vmatprep.subr.mxu0 0.0
        %724 = vmatpush1.msra.mxu0 0.0
        %725 = vmatprep.subr.mxu0 0.0
        %726 = vmatpush1.msra.mxu0 0.0
        %727 = vmatprep.subr.mxu0 0.0
        %728 = vmatpush1.msra.mxu0 0.0
        %729 = vmatprep.subr.mxu0 0.0
        %730 = vmatpush1.msra.mxu0 0.0
        %731 = vmatprep.subr.mxu0 0.0
        %732 = vmatpush1.msra.mxu0 0.0
        %733 = vmatprep.subr.mxu0 0.0
        %734 = vmatpush1.msra.mxu0 0.0
        %735 = vmatprep.subr.mxu0 0.0
        %736 = vmatpush1.msra.mxu0 0.0
        %737 = vmatprep.subr.mxu0 0.0
        %738 = vmatpush1.msra.mxu0 0.0
        %739 = vmatprep.subr.mxu0 0.0
        %740 = vmatpush1.msra.mxu0 0.0
        %741 = vmatprep.mubr.f32.mxu0 0.0
        %742 = vmatmul.mubr.f32.gmra.mrb[0].mxu0 %v675
        %v743 = vpop.f32.mrb[0].mxu0
        %v744 = vadd.f32 0.0, %v743
        %v745 = vpop.f32.mrb[0].mxu0
        %v746 = vadd.f32 0.0, %v745
        %747 = vdwg.mxu0
        %v748 = vadd.f32 %v655, %v744
        %v749 = vadd.f32 %v657, %v746
        %750 = vrot.lane.b32.xlu0 %v455, 1
        %v751 = vpop.permute.xlu0 %750
        %752 = vrot.lane.b32.xlu0 %v457, 1
        %v753 = vpop.permute.xlu0 %752
        %754 = vrot.lane.b32.xlu0 %v456, 1
        %v755 = vpop.permute.xlu0 %754
        %756 = vrot.lane.b32.xlu0 %v458, 1
        %v757 = vpop.permute.xlu0 %756
        %vm758 = vcmp.lt.s32.totalorder %v393, 1
        %v759 = vsel %vm758, %v751, %v755
        %v760 = vsel %vm758, %v753, %v757
        %v761 = vsel %vm758, %v755, %v751
        %v762 = vsel %vm758, %v757, %v753
        %s763 = scalar_lea.vmem %s4, 24
        %v764 = vld [vmem:[%s763] sm:$0xff]
        %s765 = scalar_lea.vmem %s4, 32
        %v766 = vld [vmem:[%s765] sm:$0xff]
        %v768 = vsel %vm510, %v766, 0
        %770 = vmatprep.subr.mxu0 %v432
        %771 = vmatpush1.msra.mxu0 %v431
        %772 = vmatprep.subr.mxu0 %v434
        %773 = vmatpush1.msra.mxu0 %v433
        %774 = vmatprep.subr.mxu0 0.0
        %775 = vmatpush1.msra.mxu0 0.0
        %776 = vmatprep.subr.mxu0 0.0
        %777 = vmatpush1.msra.mxu0 0.0
        %778 = vmatprep.subr.mxu0 0.0
        %779 = vmatpush1.msra.mxu0 0.0
        %780 = vmatprep.subr.mxu0 0.0
        %781 = vmatpush1.msra.mxu0 0.0
        %782 = vmatprep.subr.mxu0 0.0
        %783 = vmatpush1.msra.mxu0 0.0
        %784 = vmatprep.subr.mxu0 0.0
        %785 = vmatpush1.msra.mxu0 0.0
        %786 = vmatprep.subr.mxu0 0.0
        %787 = vmatpush1.msra.mxu0 0.0
        %788 = vmatprep.subr.mxu0 0.0
        %789 = vmatpush1.msra.mxu0 0.0
        %790 = vmatprep.subr.mxu0 0.0
        %791 = vmatpush1.msra.mxu0 0.0
        %792 = vmatprep.subr.mxu0 0.0
        %793 = vmatpush1.msra.mxu0 0.0
        %794 = vmatprep.subr.mxu0 0.0
        %795 = vmatpush1.msra.mxu0 0.0
        %796 = vmatprep.subr.mxu0 0.0
        %797 = vmatpush1.msra.mxu0 0.0
        %798 = vmatprep.subr.mxu0 0.0
        %799 = vmatpush1.msra.mxu0 0.0
        %800 = vmatprep.subr.mxu0 0.0
        %801 = vmatpush1.msra.mxu0 0.0
        %802 = vmatprep.subr.mxu0 0.0
        %803 = vmatpush1.msra.mxu0 0.0
        %804 = vmatprep.subr.mxu0 0.0
        %805 = vmatpush1.msra.mxu0 0.0
        %806 = vmatprep.subr.mxu0 0.0
        %807 = vmatpush1.msra.mxu0 0.0
        %808 = vmatprep.subr.mxu0 0.0
        %809 = vmatpush1.msra.mxu0 0.0
        %810 = vmatprep.subr.mxu0 0.0
        %811 = vmatpush1.msra.mxu0 0.0
        %812 = vmatprep.subr.mxu0 0.0
        %813 = vmatpush1.msra.mxu0 0.0
        %814 = vmatprep.subr.mxu0 0.0
        %815 = vmatpush1.msra.mxu0 0.0
        %816 = vmatprep.subr.mxu0 0.0
        %817 = vmatpush1.msra.mxu0 0.0
        %818 = vmatprep.subr.mxu0 0.0
        %819 = vmatpush1.msra.mxu0 0.0
        %820 = vmatprep.subr.mxu0 0.0
        %821 = vmatpush1.msra.mxu0 0.0
        %822 = vmatprep.subr.mxu0 0.0
        %823 = vmatpush1.msra.mxu0 0.0
        %824 = vmatprep.subr.mxu0 0.0
        %825 = vmatpush1.msra.mxu0 0.0
        %826 = vmatprep.subr.mxu0 0.0
        %827 = vmatpush1.msra.mxu0 0.0
        %828 = vmatprep.subr.mxu0 0.0
        %829 = vmatpush1.msra.mxu0 0.0
        %830 = vmatprep.subr.mxu0 0.0
        %831 = vmatpush1.msra.mxu0 0.0
        %832 = vmatprep.subr.mxu0 0.0
        %833 = vmatpush1.msra.mxu0 0.0
        %834 = vmatprep.mubr.f32.mxu0 0.0
        %835 = vmatmul.mubr.f32.gmra.mrb[0].mxu0 %v768
        %v836 = vpop.f32.mrb[0].mxu0
        %v837 = vadd.f32 0.0, %v836
        %v838 = vpop.f32.mrb[0].mxu0
        %v839 = vadd.f32 0.0, %v838
        %840 = vdwg.mxu0
        %v842 = vsel %vm510, %v764, 0
        %844 = vmatprep.subr.mxu0 %v759
        %845 = vmatpush1.msra.mxu0 %v761
        %846 = vmatprep.subr.mxu0 %v760
        %847 = vmatpush1.msra.mxu0 %v762
        %848 = vmatprep.subr.mxu0 0.0
        %849 = vmatpush1.msra.mxu0 0.0
        %850 = vmatprep.subr.mxu0 0.0
        %851 = vmatpush1.msra.mxu0 0.0
        %852 = vmatprep.subr.mxu0 0.0
        %853 = vmatpush1.msra.mxu0 0.0
        %854 = vmatprep.subr.mxu0 0.0
        %855 = vmatpush1.msra.mxu0 0.0
        %856 = vmatprep.subr.mxu0 0.0
        %857 = vmatpush1.msra.mxu0 0.0
        %858 = vmatprep.subr.mxu0 0.0
        %859 = vmatpush1.msra.mxu0 0.0
        %860 = vmatprep.subr.mxu0 0.0
        %861 = vmatpush1.msra.mxu0 0.0
        %862 = vmatprep.subr.mxu0 0.0
        %863 = vmatpush1.msra.mxu0 0.0
        %864 = vmatprep.subr.mxu0 0.0
        %865 = vmatpush1.msra.mxu0 0.0
        %866 = vmatprep.subr.mxu0 0.0
        %867 = vmatpush1.msra.mxu0 0.0
        %868 = vmatprep.subr.mxu0 0.0
        %869 = vmatpush1.msra.mxu0 0.0
        %870 = vmatprep.subr.mxu0 0.0
        %871 = vmatpush1.msra.mxu0 0.0
        %872 = vmatprep.subr.mxu0 0.0
        %873 = vmatpush1.msra.mxu0 0.0
        %874 = vmatprep.subr.mxu0 0.0
        %875 = vmatpush1.msra.mxu0 0.0
        %876 = vmatprep.subr.mxu0 0.0
        %877 = vmatpush1.msra.mxu0 0.0
        %878 = vmatprep.subr.mxu0 0.0
        %879 = vmatpush1.msra.mxu0 0.0
        %880 = vmatprep.subr.mxu0 0.0
        %881 = vmatpush1.msra.mxu0 0.0
        %882 = vmatprep.subr.mxu0 0.0
        %883 = vmatpush1.msra.mxu0 0.0
        %884 = vmatprep.subr.mxu0 0.0
        %885 = vmatpush1.msra.mxu0 0.0
        %886 = vmatprep.subr.mxu0 0.0
        %887 = vmatpush1.msra.mxu0 0.0
        %888 = vmatprep.subr.mxu0 0.0
        %889 = vmatpush1.msra.mxu0 0.0
        %890 = vmatprep.subr.mxu0 0.0
        %891 = vmatpush1.msra.mxu0 0.0
        %892 = vmatprep.subr.mxu0 0.0
        %893 = vmatpush1.msra.mxu0 0.0
        %894 = vmatprep.subr.mxu0 0.0
        %895 = vmatpush1.msra.mxu0 0.0
        %896 = vmatprep.subr.mxu0 0.0
        %897 = vmatpush1.msra.mxu0 0.0
        %898 = vmatprep.subr.mxu0 0.0
        %899 = vmatpush1.msra.mxu0 0.0
        %900 = vmatprep.subr.mxu0 0.0
        %901 = vmatpush1.msra.mxu0 0.0
        %902 = vmatprep.subr.mxu0 0.0
        %903 = vmatpush1.msra.mxu0 0.0
        %904 = vmatprep.subr.mxu0 0.0
        %905 = vmatpush1.msra.mxu0 0.0
        %906 = vmatprep.subr.mxu0 0.0
        %907 = vmatpush1.msra.mxu0 0.0
        %908 = vmatprep.mubr.f32.mxu0 0.0
        %909 = vmatmul.mubr.f32.gmra.mrb[0].mxu0 %v842
        %v910 = vpop.f32.mrb[0].mxu0
        %v911 = vadd.f32 %v837, %v910
        %v912 = vpop.f32.mrb[0].mxu0
        %v913 = vadd.f32 %v839, %v912
        %914 = vdwg.mxu0
        %915 = vrot.lane.b32.xlu0 %v477, 127
        %v916 = vpop.permute.xlu0 %915
        %917 = vrot.lane.b32.xlu0 %v479, 127
        %v918 = vpop.permute.xlu0 %917
        %919 = vrot.lane.b32.xlu0 %v478, 127
        %v920 = vpop.permute.xlu0 %919
        %921 = vrot.lane.b32.xlu0 %v480, 127
        %v922 = vpop.permute.xlu0 %921
        %vm923 = vcmp.lt.s32.totalorder %v393, 127
        %v924 = vsel %vm923, %v916, %v920
        %v925 = vsel %vm923, %v918, %v922
        %v926 = vsel %vm923, %v920, %v916
        %v927 = vsel %vm923, %v922, %v918
        %s928 = scalar_lea.vmem %s4, 40
        %v929 = vld [vmem:[%s928] sm:$0xff]
        %v931 = vsel %vm510, %v929, 0
        %933 = vmatprep.subr.mxu0 %v926
        %934 = vmatpush1.msra.mxu0 %v924
        %935 = vmatprep.subr.mxu0 %v927
        %936 = vmatpush1.msra.mxu0 %v925
        %937 = vmatprep.subr.mxu0 0.0
        %938 = vmatpush1.msra.mxu0 0.0
        %939 = vmatprep.subr.mxu0 0.0
        %940 = vmatpush1.msra.mxu0 0.0
        %941 = vmatprep.subr.mxu0 0.0
        %942 = vmatpush1.msra.mxu0 0.0
        %943 = vmatprep.subr.mxu0 0.0
        %944 = vmatpush1.msra.mxu0 0.0
        %945 = vmatprep.subr.mxu0 0.0
        %946 = vmatpush1.msra.mxu0 0.0
        %947 = vmatprep.subr.mxu0 0.0
        %948 = vmatpush1.msra.mxu0 0.0
        %949 = vmatprep.subr.mxu0 0.0
        %950 = vmatpush1.msra.mxu0 0.0
        %951 = vmatprep.subr.mxu0 0.0
        %952 = vmatpush1.msra.mxu0 0.0
        %953 = vmatprep.subr.mxu0 0.0
        %954 = vmatpush1.msra.mxu0 0.0
        %955 = vmatprep.subr.mxu0 0.0
        %956 = vmatpush1.msra.mxu0 0.0
        %957 = vmatprep.subr.mxu0 0.0
        %958 = vmatpush1.msra.mxu0 0.0
        %959 = vmatprep.subr.mxu0 0.0
        %960 = vmatpush1.msra.mxu0 0.0
        %961 = vmatprep.subr.mxu0 0.0
        %962 = vmatpush1.msra.mxu0 0.0
        %963 = vmatprep.subr.mxu0 0.0
        %964 = vmatpush1.msra.mxu0 0.0
        %965 = vmatprep.subr.mxu0 0.0
        %966 = vmatpush1.msra.mxu0 0.0
        %967 = vmatprep.subr.mxu0 0.0
        %968 = vmatpush1.msra.mxu0 0.0
        %969 = vmatprep.subr.mxu0 0.0
        %970 = vmatpush1.msra.mxu0 0.0
        %971 = vmatprep.subr.mxu0 0.0
        %972 = vmatpush1.msra.mxu0 0.0
        %973 = vmatprep.subr.mxu0 0.0
        %974 = vmatpush1.msra.mxu0 0.0
        %975 = vmatprep.subr.mxu0 0.0
        %976 = vmatpush1.msra.mxu0 0.0
        %977 = vmatprep.subr.mxu0 0.0
        %978 = vmatpush1.msra.mxu0 0.0
        %979 = vmatprep.subr.mxu0 0.0
        %980 = vmatpush1.msra.mxu0 0.0
        %981 = vmatprep.subr.mxu0 0.0
        %982 = vmatpush1.msra.mxu0 0.0
        %983 = vmatprep.subr.mxu0 0.0
        %984 = vmatpush1.msra.mxu0 0.0
        %985 = vmatprep.subr.mxu0 0.0
        %986 = vmatpush1.msra.mxu0 0.0
        %987 = vmatprep.subr.mxu0 0.0
        %988 = vmatpush1.msra.mxu0 0.0
        %989 = vmatprep.subr.mxu0 0.0
        %990 = vmatpush1.msra.mxu0 0.0
        %991 = vmatprep.subr.mxu0 0.0
        %992 = vmatpush1.msra.mxu0 0.0
        %993 = vmatprep.subr.mxu0 0.0
        %994 = vmatpush1.msra.mxu0 0.0
        %995 = vmatprep.subr.mxu0 0.0
        %996 = vmatpush1.msra.mxu0 0.0
        %997 = vmatprep.mubr.f32.mxu0 0.0
        %998 = vmatmul.mubr.f32.gmra.mrb[0].mxu0 %v931
        %v999 = vpop.f32.mrb[0].mxu0
        %v1000 = vadd.f32 0.0, %v999
        %v1001 = vpop.f32.mrb[0].mxu0
        %v1002 = vadd.f32 0.0, %v1001
        %1003 = vdwg.mxu0
        %v1004 = vadd.f32 %v911, %v1000
        %v1005 = vadd.f32 %v913, %v1002
        %1006 = vrot.lane.b32.xlu0 %v455, 113
        %v1007 = vpop.permute.xlu0 %1006
        %1008 = vrot.lane.b32.xlu0 %v457, 113
        %v1009 = vpop.permute.xlu0 %1008
        %1010 = vrot.lane.b32.xlu0 %v456, 113
        %v1011 = vpop.permute.xlu0 %1010
        %1012 = vrot.lane.b32.xlu0 %v458, 113
        %v1013 = vpop.permute.xlu0 %1012
        %vm1014 = vcmp.lt.s32.totalorder %v393, 113
        %v1015 = vsel %vm1014, %v1007, %v1011
        %v1016 = vsel %vm1014, %v1009, %v1013
        %v1017 = vsel %vm1014, %v1011, %v1007
        %v1018 = vsel %vm1014, %v1013, %v1009
        %s1019 = scalar_lea.vmem %s4, 48
        %v1020 = vld [vmem:[%s1019] sm:$0xff]
        %1021 = vrot.lane.b32.xlu0 %v431, 112
        %v1022 = vpop.permute.xlu0 %1021
        %1023 = vrot.lane.b32.xlu0 %v433, 112
        %v1024 = vpop.permute.xlu0 %1023
        %1025 = vrot.lane.b32.xlu0 %v432, 112
        %v1026 = vpop.permute.xlu0 %1025
        %1027 = vrot.lane.b32.xlu0 %v434, 112
        %v1028 = vpop.permute.xlu0 %1027
        %vm1029 = vcmp.lt.s32.totalorder %v393, 112
        %v1030 = vsel %vm1029, %v1022, %v1026
        %v1031 = vsel %vm1029, %v1024, %v1028
        %v1032 = vsel %vm1029, %v1026, %v1022
        %v1033 = vsel %vm1029, %v1028, %v1024
        %s1034 = scalar_lea.vmem %s4, 56
        %v1035 = vld [vmem:[%s1034] sm:$0xff]
        %v1037 = vsel %vm510, %v1035, 0
        %1039 = vmatprep.subr.mxu0 %v1032
        %1040 = vmatpush1.msra.mxu0 %v1030
        %1041 = vmatprep.subr.mxu0 %v1033
        %1042 = vmatpush1.msra.mxu0 %v1031
        %1043 = vmatprep.subr.mxu0 0.0
        %1044 = vmatpush1.msra.mxu0 0.0
        %1045 = vmatprep.subr.mxu0 0.0
        %1046 = vmatpush1.msra.mxu0 0.0
        %1047 = vmatprep.subr.mxu0 0.0
        %1048 = vmatpush1.msra.mxu0 0.0
        %1049 = vmatprep.subr.mxu0 0.0
        %1050 = vmatpush1.msra.mxu0 0.0
        %1051 = vmatprep.subr.mxu0 0.0
        %1052 = vmatpush1.msra.mxu0 0.0
        %1053 = vmatprep.subr.mxu0 0.0
        %1054 = vmatpush1.msra.mxu0 0.0
        %1055 = vmatprep.subr.mxu0 0.0
        %1056 = vmatpush1.msra.mxu0 0.0
        %1057 = vmatprep.subr.mxu0 0.0
        %1058 = vmatpush1.msra.mxu0 0.0
        %1059 = vmatprep.subr.mxu0 0.0
        %1060 = vmatpush1.msra.mxu0 0.0
        %1061 = vmatprep.subr.mxu0 0.0
        %1062 = vmatpush1.msra.mxu0 0.0
        %1063 = vmatprep.subr.mxu0 0.0
        %1064 = vmatpush1.msra.mxu0 0.0
        %1065 = vmatprep.subr.mxu0 0.0
        %1066 = vmatpush1.msra.mxu0 0.0
        %1067 = vmatprep.subr.mxu0 0.0
        %1068 = vmatpush1.msra.mxu0 0.0
        %1069 = vmatprep.subr.mxu0 0.0
        %1070 = vmatpush1.msra.mxu0 0.0
        %1071 = vmatprep.subr.mxu0 0.0
        %1072 = vmatpush1.msra.mxu0 0.0
        %1073 = vmatprep.subr.mxu0 0.0
        %1074 = vmatpush1.msra.mxu0 0.0
        %1075 = vmatprep.subr.mxu0 0.0
        %1076 = vmatpush1.msra.mxu0 0.0
        %1077 = vmatprep.subr.mxu0 0.0
        %1078 = vmatpush1.msra.mxu0 0.0
        %1079 = vmatprep.subr.mxu0 0.0
        %1080 = vmatpush1.msra.mxu0 0.0
        %1081 = vmatprep.subr.mxu0 0.0
        %1082 = vmatpush1.msra.mxu0 0.0
        %1083 = vmatprep.subr.mxu0 0.0
        %1084 = vmatpush1.msra.mxu0 0.0
        %1085 = vmatprep.subr.mxu0 0.0
        %1086 = vmatpush1.msra.mxu0 0.0
        %1087 = vmatprep.subr.mxu0 0.0
        %1088 = vmatpush1.msra.mxu0 0.0
        %1089 = vmatprep.subr.mxu0 0.0
        %1090 = vmatpush1.msra.mxu0 0.0
        %1091 = vmatprep.subr.mxu0 0.0
        %1092 = vmatpush1.msra.mxu0 0.0
        %1093 = vmatprep.subr.mxu0 0.0
        %1094 = vmatpush1.msra.mxu0 0.0
        %1095 = vmatprep.subr.mxu0 0.0
        %1096 = vmatpush1.msra.mxu0 0.0
        %1097 = vmatprep.subr.mxu0 0.0
        %1098 = vmatpush1.msra.mxu0 0.0
        %1099 = vmatprep.subr.mxu0 0.0
        %1100 = vmatpush1.msra.mxu0 0.0
        %1101 = vmatprep.subr.mxu0 0.0
        %1102 = vmatpush1.msra.mxu0 0.0
        %1103 = vmatprep.mubr.f32.mxu0 0.0
        %1104 = vmatmul.mubr.f32.gmra.mrb[0].mxu0 %v1037
        %v1105 = vpop.f32.mrb[0].mxu0
        %v1106 = vadd.f32 0.0, %v1105
        %v1107 = vpop.f32.mrb[0].mxu0
        %v1108 = vadd.f32 0.0, %v1107
        %1109 = vdwg.mxu0
        %v1111 = vsel %vm510, %v1020, 0
        %1113 = vmatprep.subr.mxu0 %v1017
        %1114 = vmatpush1.msra.mxu0 %v1015
        %1115 = vmatprep.subr.mxu0 %v1018
        %1116 = vmatpush1.msra.mxu0 %v1016
        %1117 = vmatprep.subr.mxu0 0.0
        %1118 = vmatpush1.msra.mxu0 0.0
        %1119 = vmatprep.subr.mxu0 0.0
        %1120 = vmatpush1.msra.mxu0 0.0
        %1121 = vmatprep.subr.mxu0 0.0
        %1122 = vmatpush1.msra.mxu0 0.0
        %1123 = vmatprep.subr.mxu0 0.0
        %1124 = vmatpush1.msra.mxu0 0.0
        %1125 = vmatprep.subr.mxu0 0.0
        %1126 = vmatpush1.msra.mxu0 0.0
        %1127 = vmatprep.subr.mxu0 0.0
        %1128 = vmatpush1.msra.mxu0 0.0
        %1129 = vmatprep.subr.mxu0 0.0
        %1130 = vmatpush1.msra.mxu0 0.0
        %1131 = vmatprep.subr.mxu0 0.0
        %1132 = vmatpush1.msra.mxu0 0.0
        %1133 = vmatprep.subr.mxu0 0.0
        %1134 = vmatpush1.msra.mxu0 0.0
        %1135 = vmatprep.subr.mxu0 0.0
        %1136 = vmatpush1.msra.mxu0 0.0
        %1137 = vmatprep.subr.mxu0 0.0
        %1138 = vmatpush1.msra.mxu0 0.0
        %1139 = vmatprep.subr.mxu0 0.0
        %1140 = vmatpush1.msra.mxu0 0.0
        %1141 = vmatprep.subr.mxu0 0.0
        %1142 = vmatpush1.msra.mxu0 0.0
        %1143 = vmatprep.subr.mxu0 0.0
        %1144 = vmatpush1.msra.mxu0 0.0
        %1145 = vmatprep.subr.mxu0 0.0
        %1146 = vmatpush1.msra.mxu0 0.0
        %1147 = vmatprep.subr.mxu0 0.0
        %1148 = vmatpush1.msra.mxu0 0.0
        %1149 = vmatprep.subr.mxu0 0.0
        %1150 = vmatpush1.msra.mxu0 0.0
        %1151 = vmatprep.subr.mxu0 0.0
        %1152 = vmatpush1.msra.mxu0 0.0
        %1153 = vmatprep.subr.mxu0 0.0
        %1154 = vmatpush1.msra.mxu0 0.0
        %1155 = vmatprep.subr.mxu0 0.0
        %1156 = vmatpush1.msra.mxu0 0.0
        %1157 = vmatprep.subr.mxu0 0.0
        %1158 = vmatpush1.msra.mxu0 0.0
        %1159 = vmatprep.subr.mxu0 0.0
        %1160 = vmatpush1.msra.mxu0 0.0
        %1161 = vmatprep.subr.mxu0 0.0
        %1162 = vmatpush1.msra.mxu0 0.0
        %1163 = vmatprep.subr.mxu0 0.0
        %1164 = vmatpush1.msra.mxu0 0.0
        %1165 = vmatprep.subr.mxu0 0.0
        %1166 = vmatpush1.msra.mxu0 0.0
        %1167 = vmatprep.subr.mxu0 0.0
        %1168 = vmatpush1.msra.mxu0 0.0
        %1169 = vmatprep.subr.mxu0 0.0
        %1170 = vmatpush1.msra.mxu0 0.0
        %1171 = vmatprep.subr.mxu0 0.0
        %1172 = vmatpush1.msra.mxu0 0.0
        %1173 = vmatprep.subr.mxu0 0.0
        %1174 = vmatpush1.msra.mxu0 0.0
        %1175 = vmatprep.subr.mxu0 0.0
        %1176 = vmatpush1.msra.mxu0 0.0
        %1177 = vmatprep.mubr.f32.mxu0 0.0
        %1178 = vmatmul.mubr.f32.gmra.mrb[0].mxu0 %v1111
        %v1179 = vpop.f32.mrb[0].mxu0
        %v1180 = vadd.f32 %v1106, %v1179
        %v1181 = vpop.f32.mrb[0].mxu0
        %v1182 = vadd.f32 %v1108, %v1181
        %1183 = vdwg.mxu0
        %1184 = vrot.lane.b32.xlu0 %v477, 111
        %v1185 = vpop.permute.xlu0 %1184
        %1186 = vrot.lane.b32.xlu0 %v479, 111
        %v1187 = vpop.permute.xlu0 %1186
        %1188 = vrot.lane.b32.xlu0 %v478, 111
        %v1189 = vpop.permute.xlu0 %1188
        %1190 = vrot.lane.b32.xlu0 %v480, 111
        %v1191 = vpop.permute.xlu0 %1190
        %vm1192 = vcmp.lt.s32.totalorder %v393, 111
        %v1193 = vsel %vm1192, %v1185, %v1189
        %v1194 = vsel %vm1192, %v1187, %v1191
        %v1195 = vsel %vm1192, %v1189, %v1185
        %v1196 = vsel %vm1192, %v1191, %v1187
        %s1197 = scalar_lea.vmem %s4, 64
        %v1198 = vld [vmem:[%s1197] sm:$0xff]
        %v1200 = vsel %vm510, %v1198, 0
        %1202 = vmatprep.subr.mxu0 %v1195
        %1203 = vmatpush1.msra.mxu0 %v1193
        %1204 = vmatprep.subr.mxu0 %v1196
        %1205 = vmatpush1.msra.mxu0 %v1194
        %1206 = vmatprep.subr.mxu0 0.0
        %1207 = vmatpush1.msra.mxu0 0.0
        %1208 = vmatprep.subr.mxu0 0.0
        %1209 = vmatpush1.msra.mxu0 0.0
        %1210 = vmatprep.subr.mxu0 0.0
        %1211 = vmatpush1.msra.mxu0 0.0
        %1212 = vmatprep.subr.mxu0 0.0
        %1213 = vmatpush1.msra.mxu0 0.0
        %1214 = vmatprep.subr.mxu0 0.0
        %1215 = vmatpush1.msra.mxu0 0.0
        %1216 = vmatprep.subr.mxu0 0.0
        %1217 = vmatpush1.msra.mxu0 0.0
        %1218 = vmatprep.subr.mxu0 0.0
        %1219 = vmatpush1.msra.mxu0 0.0
        %1220 = vmatprep.subr.mxu0 0.0
        %1221 = vmatpush1.msra.mxu0 0.0
        %1222 = vmatprep.subr.mxu0 0.0
        %1223 = vmatpush1.msra.mxu0 0.0
        %1224 = vmatprep.subr.mxu0 0.0
        %1225 = vmatpush1.msra.mxu0 0.0
        %1226 = vmatprep.subr.mxu0 0.0
        %1227 = vmatpush1.msra.mxu0 0.0
        %1228 = vmatprep.subr.mxu0 0.0
        %1229 = vmatpush1.msra.mxu0 0.0
        %1230 = vmatprep.subr.mxu0 0.0
        %1231 = vmatpush1.msra.mxu0 0.0
        %1232 = vmatprep.subr.mxu0 0.0
        %1233 = vmatpush1.msra.mxu0 0.0
        %1234 = vmatprep.subr.mxu0 0.0
        %1235 = vmatpush1.msra.mxu0 0.0
        %1236 = vmatprep.subr.mxu0 0.0
        %1237 = vmatpush1.msra.mxu0 0.0
        %1238 = vmatprep.subr.mxu0 0.0
        %1239 = vmatpush1.msra.mxu0 0.0
        %1240 = vmatprep.subr.mxu0 0.0
        %1241 = vmatpush1.msra.mxu0 0.0
        %1242 = vmatprep.subr.mxu0 0.0
        %1243 = vmatpush1.msra.mxu0 0.0
        %1244 = vmatprep.subr.mxu0 0.0
        %1245 = vmatpush1.msra.mxu0 0.0
        %1246 = vmatprep.subr.mxu0 0.0
        %1247 = vmatpush1.msra.mxu0 0.0
        %1248 = vmatprep.subr.mxu0 0.0
        %1249 = vmatpush1.msra.mxu0 0.0
        %1250 = vmatprep.subr.mxu0 0.0
        %1251 = vmatpush1.msra.mxu0 0.0
        %1252 = vmatprep.subr.mxu0 0.0
        %1253 = vmatpush1.msra.mxu0 0.0
        %1254 = vmatprep.subr.mxu0 0.0
        %1255 = vmatpush1.msra.mxu0 0.0
        %1256 = vmatprep.subr.mxu0 0.0
        %1257 = vmatpush1.msra.mxu0 0.0
        %1258 = vmatprep.subr.mxu0 0.0
        %1259 = vmatpush1.msra.mxu0 0.0
        %1260 = vmatprep.subr.mxu0 0.0
        %1261 = vmatpush1.msra.mxu0 0.0
        %1262 = vmatprep.subr.mxu0 0.0
        %1263 = vmatpush1.msra.mxu0 0.0
        %1264 = vmatprep.subr.mxu0 0.0
        %1265 = vmatpush1.msra.mxu0 0.0
        %1266 = vmatprep.mubr.f32.mxu0 0.0
        %1267 = vmatmul.mubr.f32.gmra.mrb[0].mxu0 %v1200
        %v1268 = vpop.f32.mrb[0].mxu0
        %v1269 = vadd.f32 0.0, %v1268
        %v1270 = vpop.f32.mrb[0].mxu0
        %v1271 = vadd.f32 0.0, %v1270
        %1272 = vdwg.mxu0
        %v1273 = vadd.f32 %v1180, %v1269
        %v1274 = vadd.f32 %v1182, %v1271
        %v1275 = vmul.f32 %v748, %v399
        %v1276 = vmul.f32 %v749, %v400
        %v1277 = vadd.f32 %v1275, %v1004
        %v1278 = vadd.f32 %v1276, %v1005
        %v1279 = vmul.f32 %v1273, %v405
        %v1280 = vmul.f32 %v1274, %v406
        %v1281 = vadd.f32 %v1277, %v1279
        %v1282 = vadd.f32 %v1278, %v1280
        %1284 = vset.pattern.permute.xlu0 0
        %1285 = vperm.xlu0 %1284, %v435
        %v1286 = vpop.permute.xlu0 %1285
        %v1288 = vadd.f32 %v1281, %v1286
        %v1289 = vadd.f32 %v1282, %v1286
        %v1290 = vmax.f32 %v1288, 0.0
        %v1291 = vmax.f32 %v1289, 0.0
        %v1292 = vld [vmem:[%s7] sm:$0xff]
        %v1293 = vmul.f32 %v1290, %v450
        %v1294 = vmul.f32 %v1291, %v454
        %v1295 = vmul.f32 %v1290, %v472
        %v1296 = vmul.f32 %v1291, %v476
        %1297 = vrot.lane.b32.xlu0 %v1293, 17
        %v1298 = vpop.permute.xlu0 %1297
        %1299 = vrot.lane.b32.xlu0 %v1294, 17
        %v1300 = vpop.permute.xlu0 %1299
        %v1301 = vsel %vm489, %v1298, %v1300
        %v1302 = vsel %vm489, %v1300, %v1298
        %v1303 = vld [vmem:[%s6] sm:$0xff]
        %1304 = vrot.lane.b32.xlu0 %v1290, 16
        %v1305 = vpop.permute.xlu0 %1304
        %1306 = vrot.lane.b32.xlu0 %v1291, 16
        %v1307 = vpop.permute.xlu0 %1306
        %v1308 = vsel %vm503, %v1305, %v1307
        %v1309 = vsel %vm503, %v1307, %v1305
        %s1310 = scalar_lea.vmem %s6, 8
        %v1311 = vld [vmem:[%s1310] sm:$0xff]
        %vm1312 = vcmask 64512
        %v1314 = vsel %vm1312, %v1311, 0
        %1316 = vmatprep.subr.mxu0 %v1308
        %1317 = vmatpush1.msra.mxu0 %v1309
        %1318 = vmatprep.subr.mxu0 0.0
        %1319 = vmatpush1.msra.mxu0 0.0
        %1320 = vmatprep.subr.mxu0 0.0
        %1321 = vmatpush1.msra.mxu0 0.0
        %1322 = vmatprep.subr.mxu0 0.0
        %1323 = vmatpush1.msra.mxu0 0.0
        %1324 = vmatprep.subr.mxu0 0.0
        %1325 = vmatpush1.msra.mxu0 0.0
        %1326 = vmatprep.subr.mxu0 0.0
        %1327 = vmatpush1.msra.mxu0 0.0
        %1328 = vmatprep.subr.mxu0 0.0
        %1329 = vmatpush1.msra.mxu0 0.0
        %1330 = vmatprep.subr.mxu0 0.0
        %1331 = vmatpush1.msra.mxu0 0.0
        %1332 = vmatprep.subr.mxu0 0.0
        %1333 = vmatpush1.msra.mxu0 0.0
        %1334 = vmatprep.subr.mxu0 0.0
        %1335 = vmatpush1.msra.mxu0 0.0
        %1336 = vmatprep.subr.mxu0 0.0
        %1337 = vmatpush1.msra.mxu0 0.0
        %1338 = vmatprep.subr.mxu0 0.0
        %1339 = vmatpush1.msra.mxu0 0.0
        %1340 = vmatprep.subr.mxu0 0.0
        %1341 = vmatpush1.msra.mxu0 0.0
        %1342 = vmatprep.subr.mxu0 0.0
        %1343 = vmatpush1.msra.mxu0 0.0
        %1344 = vmatprep.subr.mxu0 0.0
        %1345 = vmatpush1.msra.mxu0 0.0
        %1346 = vmatprep.subr.mxu0 0.0
        %1347 = vmatpush1.msra.mxu0 0.0
        %1348 = vmatprep.subr.mxu0 0.0
        %1349 = vmatpush1.msra.mxu0 0.0
        %1350 = vmatprep.subr.mxu0 0.0
        %1351 = vmatpush1.msra.mxu0 0.0
        %1352 = vmatprep.subr.mxu0 0.0
        %1353 = vmatpush1.msra.mxu0 0.0
        %1354 = vmatprep.subr.mxu0 0.0
        %1355 = vmatpush1.msra.mxu0 0.0
        %1356 = vmatprep.subr.mxu0 0.0
        %1357 = vmatpush1.msra.mxu0 0.0
        %1358 = vmatprep.subr.mxu0 0.0
        %1359 = vmatpush1.msra.mxu0 0.0
        %1360 = vmatprep.subr.mxu0 0.0
        %1361 = vmatpush1.msra.mxu0 0.0
        %1362 = vmatprep.subr.mxu0 0.0
        %1363 = vmatpush1.msra.mxu0 0.0
        %1364 = vmatprep.subr.mxu0 0.0
        %1365 = vmatpush1.msra.mxu0 0.0
        %1366 = vmatprep.subr.mxu0 0.0
        %1367 = vmatpush1.msra.mxu0 0.0
        %1368 = vmatprep.subr.mxu0 0.0
        %1369 = vmatpush1.msra.mxu0 0.0
        %1370 = vmatprep.subr.mxu0 0.0
        %1371 = vmatpush1.msra.mxu0 0.0
        %1372 = vmatprep.subr.mxu0 0.0
        %1373 = vmatpush1.msra.mxu0 0.0
        %1374 = vmatprep.subr.mxu0 0.0
        %1375 = vmatpush1.msra.mxu0 0.0
        %1376 = vmatprep.subr.mxu0 0.0
        %1377 = vmatpush1.msra.mxu0 0.0
        %1378 = vmatprep.subr.mxu0 0.0
        %1379 = vmatpush1.msra.mxu0 0.0
        %1380 = vmatprep.mubr.f32.mxu0 0.0
        %1381 = vmatmul.mubr.f32.gmra.mrb[0].mxu0 %v1314
        %v1382 = vpop.f32.mrb[0].mxu0
        %v1383 = vadd.f32 0.0, %v1382
        %v1384 = vpop.f32.mrb[0].mxu0
        %v1385 = vadd.f32 0.0, %v1384
        %1386 = vdwg.mxu0
        %v1388 = vsel %vm1312, %v1303, 0
        %1390 = vmatprep.subr.mxu0 %v1301
        %1391 = vmatpush1.msra.mxu0 %v1302
        %1392 = vmatprep.subr.mxu0 0.0
        %1393 = vmatpush1.msra.mxu0 0.0
        %1394 = vmatprep.subr.mxu0 0.0
        %1395 = vmatpush1.msra.mxu0 0.0
        %1396 = vmatprep.subr.mxu0 0.0
        %1397 = vmatpush1.msra.mxu0 0.0
        %1398 = vmatprep.subr.mxu0 0.0
        %1399 = vmatpush1.msra.mxu0 0.0
        %1400 = vmatprep.subr.mxu0 0.0
        %1401 = vmatpush1.msra.mxu0 0.0
        %1402 = vmatprep.subr.mxu0 0.0
        %1403 = vmatpush1.msra.mxu0 0.0
        %1404 = vmatprep.subr.mxu0 0.0
        %1405 = vmatpush1.msra.mxu0 0.0
        %1406 = vmatprep.subr.mxu0 0.0
        %1407 = vmatpush1.msra.mxu0 0.0
        %1408 = vmatprep.subr.mxu0 0.0
        %1409 = vmatpush1.msra.mxu0 0.0
        %1410 = vmatprep.subr.mxu0 0.0
        %1411 = vmatpush1.msra.mxu0 0.0
        %1412 = vmatprep.subr.mxu0 0.0
        %1413 = vmatpush1.msra.mxu0 0.0
        %1414 = vmatprep.subr.mxu0 0.0
        %1415 = vmatpush1.msra.mxu0 0.0
        %1416 = vmatprep.subr.mxu0 0.0
        %1417 = vmatpush1.msra.mxu0 0.0
        %1418 = vmatprep.subr.mxu0 0.0
        %1419 = vmatpush1.msra.mxu0 0.0
        %1420 = vmatprep.subr.mxu0 0.0
        %1421 = vmatpush1.msra.mxu0 0.0
        %1422 = vmatprep.subr.mxu0 0.0
        %1423 = vmatpush1.msra.mxu0 0.0
        %1424 = vmatprep.subr.mxu0 0.0
        %1425 = vmatpush1.msra.mxu0 0.0
        %1426 = vmatprep.subr.mxu0 0.0
        %1427 = vmatpush1.msra.mxu0 0.0
        %1428 = vmatprep.subr.mxu0 0.0
        %1429 = vmatpush1.msra.mxu0 0.0
        %1430 = vmatprep.subr.mxu0 0.0
        %1431 = vmatpush1.msra.mxu0 0.0
        %1432 = vmatprep.subr.mxu0 0.0
        %1433 = vmatpush1.msra.mxu0 0.0
        %1434 = vmatprep.subr.mxu0 0.0
        %1435 = vmatpush1.msra.mxu0 0.0
        %1436 = vmatprep.subr.mxu0 0.0
        %1437 = vmatpush1.msra.mxu0 0.0
        %1438 = vmatprep.subr.mxu0 0.0
        %1439 = vmatpush1.msra.mxu0 0.0
        %1440 = vmatprep.subr.mxu0 0.0
        %1441 = vmatpush1.msra.mxu0 0.0
        %1442 = vmatprep.subr.mxu0 0.0
        %1443 = vmatpush1.msra.mxu0 0.0
        %1444 = vmatprep.subr.mxu0 0.0
        %1445 = vmatpush1.msra.mxu0 0.0
        %1446 = vmatprep.subr.mxu0 0.0
        %1447 = vmatpush1.msra.mxu0 0.0
        %1448 = vmatprep.subr.mxu0 0.0
        %1449 = vmatpush1.msra.mxu0 0.0
        %1450 = vmatprep.subr.mxu0 0.0
        %1451 = vmatpush1.msra.mxu0 0.0
        %1452 = vmatprep.subr.mxu0 0.0
        %1453 = vmatpush1.msra.mxu0 0.0
        %1454 = vmatprep.mubr.f32.mxu0 0.0
        %1455 = vmatmul.mubr.f32.gmra.mrb[0].mxu0 %v1388
        %v1456 = vpop.f32.mrb[0].mxu0
        %v1457 = vadd.f32 %v1383, %v1456
        %v1458 = vpop.f32.mrb[0].mxu0
        %v1459 = vadd.f32 %v1385, %v1458
        %1460 = vdwg.mxu0
        %1461 = vrot.lane.b32.xlu0 %v1295, 15
        %v1462 = vpop.permute.xlu0 %1461
        %1463 = vrot.lane.b32.xlu0 %v1296, 15
        %v1464 = vpop.permute.xlu0 %1463
        %v1465 = vsel %vm667, %v1462, %v1464
        %v1466 = vsel %vm667, %v1464, %v1462
        %s1467 = scalar_lea.vmem %s6, 16
        %v1468 = vld [vmem:[%s1467] sm:$0xff]
        %v1470 = vsel %vm1312, %v1468, 0
        %1472 = vmatprep.subr.mxu0 %v1465
        %1473 = vmatpush1.msra.mxu0 %v1466
        %1474 = vmatprep.subr.mxu0 0.0
        %1475 = vmatpush1.msra.mxu0 0.0
        %1476 = vmatprep.subr.mxu0 0.0
        %1477 = vmatpush1.msra.mxu0 0.0
        %1478 = vmatprep.subr.mxu0 0.0
        %1479 = vmatpush1.msra.mxu0 0.0
        %1480 = vmatprep.subr.mxu0 0.0
        %1481 = vmatpush1.msra.mxu0 0.0
        %1482 = vmatprep.subr.mxu0 0.0
        %1483 = vmatpush1.msra.mxu0 0.0
        %1484 = vmatprep.subr.mxu0 0.0
        %1485 = vmatpush1.msra.mxu0 0.0
        %1486 = vmatprep.subr.mxu0 0.0
        %1487 = vmatpush1.msra.mxu0 0.0
        %1488 = vmatprep.subr.mxu0 0.0
        %1489 = vmatpush1.msra.mxu0 0.0
        %1490 = vmatprep.subr.mxu0 0.0
        %1491 = vmatpush1.msra.mxu0 0.0
        %1492 = vmatprep.subr.mxu0 0.0
        %1493 = vmatpush1.msra.mxu0 0.0
        %1494 = vmatprep.subr.mxu0 0.0
        %1495 = vmatpush1.msra.mxu0 0.0
        %1496 = vmatprep.subr.mxu0 0.0
        %1497 = vmatpush1.msra.mxu0 0.0
        %1498 = vmatprep.subr.mxu0 0.0
        %1499 = vmatpush1.msra.mxu0 0.0
        %1500 = vmatprep.subr.mxu0 0.0
        %1501 = vmatpush1.msra.mxu0 0.0
        %1502 = vmatprep.subr.mxu0 0.0
        %1503 = vmatpush1.msra.mxu0 0.0
        %1504 = vmatprep.subr.mxu0 0.0
        %1505 = vmatpush1.msra.mxu0 0.0
        %1506 = vmatprep.subr.mxu0 0.0
        %1507 = vmatpush1.msra.mxu0 0.0
        %1508 = vmatprep.subr.mxu0 0.0
        %1509 = vmatpush1.msra.mxu0 0.0
        %1510 = vmatprep.subr.mxu0 0.0
        %1511 = vmatpush1.msra.mxu0 0.0
        %1512 = vmatprep.subr.mxu0 0.0
        %1513 = vmatpush1.msra.mxu0 0.0
        %1514 = vmatprep.subr.mxu0 0.0
        %1515 = vmatpush1.msra.mxu0 0.0
        %1516 = vmatprep.subr.mxu0 0.0
        %1517 = vmatpush1.msra.mxu0 0.0
        %1518 = vmatprep.subr.mxu0 0.0
        %1519 = vmatpush1.msra.mxu0 0.0
        %1520 = vmatprep.subr.mxu0 0.0
        %1521 = vmatpush1.msra.mxu0 0.0
        %1522 = vmatprep.subr.mxu0 0.0
        %1523 = vmatpush1.msra.mxu0 0.0
        %1524 = vmatprep.subr.mxu0 0.0
        %1525 = vmatpush1.msra.mxu0 0.0
        %1526 = vmatprep.subr.mxu0 0.0
        %1527 = vmatpush1.msra.mxu0 0.0
        %1528 = vmatprep.subr.mxu0 0.0
        %1529 = vmatpush1.msra.mxu0 0.0
        %1530 = vmatprep.subr.mxu0 0.0
        %1531 = vmatpush1.msra.mxu0 0.0
        %1532 = vmatprep.subr.mxu0 0.0
        %1533 = vmatpush1.msra.mxu0 0.0
        %1534 = vmatprep.subr.mxu0 0.0
        %1535 = vmatpush1.msra.mxu0 0.0
        %1536 = vmatprep.mubr.f32.mxu0 0.0
        %1537 = vmatmul.mubr.f32.gmra.mrb[0].mxu0 %v1470
        %v1538 = vpop.f32.mrb[0].mxu0
        %v1539 = vadd.f32 0.0, %v1538
        %v1540 = vpop.f32.mrb[0].mxu0
        %v1541 = vadd.f32 0.0, %v1540
        %1542 = vdwg.mxu0
        %v1543 = vadd.f32 %v1457, %v1539
        %v1544 = vadd.f32 %v1459, %v1541
        %1545 = vrot.lane.b32.xlu0 %v1293, 1
        %v1546 = vpop.permute.xlu0 %1545
        %1547 = vrot.lane.b32.xlu0 %v1294, 1
        %v1548 = vpop.permute.xlu0 %1547
        %v1549 = vsel %vm758, %v1546, %v1548
        %v1550 = vsel %vm758, %v1548, %v1546
        %s1551 = scalar_lea.vmem %s6, 24
        %v1552 = vld [vmem:[%s1551] sm:$0xff]
        %s1553 = scalar_lea.vmem %s6, 32
        %v1554 = vld [vmem:[%s1553] sm:$0xff]
        %v1556 = vsel %vm1312, %v1554, 0
        %1558 = vmatprep.subr.mxu0 %v1291
        %1559 = vmatpush1.msra.mxu0 %v1290
        %1560 = vmatprep.subr.mxu0 0.0
        %1561 = vmatpush1.msra.mxu0 0.0
        %1562 = vmatprep.subr.mxu0 0.0
        %1563 = vmatpush1.msra.mxu0 0.0
        %1564 = vmatprep.subr.mxu0 0.0
        %1565 = vmatpush1.msra.mxu0 0.0
        %1566 = vmatprep.subr.mxu0 0.0
        %1567 = vmatpush1.msra.mxu0 0.0
        %1568 = vmatprep.subr.mxu0 0.0
        %1569 = vmatpush1.msra.mxu0 0.0
        %1570 = vmatprep.subr.mxu0 0.0
        %1571 = vmatpush1.msra.mxu0 0.0
        %1572 = vmatprep.subr.mxu0 0.0
        %1573 = vmatpush1.msra.mxu0 0.0
        %1574 = vmatprep.subr.mxu0 0.0
        %1575 = vmatpush1.msra.mxu0 0.0
        %1576 = vmatprep.subr.mxu0 0.0
        %1577 = vmatpush1.msra.mxu0 0.0
        %1578 = vmatprep.subr.mxu0 0.0
        %1579 = vmatpush1.msra.mxu0 0.0
        %1580 = vmatprep.subr.mxu0 0.0
        %1581 = vmatpush1.msra.mxu0 0.0
        %1582 = vmatprep.subr.mxu0 0.0
        %1583 = vmatpush1.msra.mxu0 0.0
        %1584 = vmatprep.subr.mxu0 0.0
        %1585 = vmatpush1.msra.mxu0 0.0
        %1586 = vmatprep.subr.mxu0 0.0
        %1587 = vmatpush1.msra.mxu0 0.0
        %1588 = vmatprep.subr.mxu0 0.0
        %1589 = vmatpush1.msra.mxu0 0.0
        %1590 = vmatprep.subr.mxu0 0.0
        %1591 = vmatpush1.msra.mxu0 0.0
        %1592 = vmatprep.subr.mxu0 0.0
        %1593 = vmatpush1.msra.mxu0 0.0
        %1594 = vmatprep.subr.mxu0 0.0
        %1595 = vmatpush1.msra.mxu0 0.0
        %1596 = vmatprep.subr.mxu0 0.0
        %1597 = vmatpush1.msra.mxu0 0.0
        %1598 = vmatprep.subr.mxu0 0.0
        %1599 = vmatpush1.msra.mxu0 0.0
        %1600 = vmatprep.subr.mxu0 0.0
        %1601 = vmatpush1.msra.mxu0 0.0
        %1602 = vmatprep.subr.mxu0 0.0
        %1603 = vmatpush1.msra.mxu0 0.0
        %1604 = vmatprep.subr.mxu0 0.0
        %1605 = vmatpush1.msra.mxu0 0.0
        %1606 = vmatprep.subr.mxu0 0.0
        %1607 = vmatpush1.msra.mxu0 0.0
        %1608 = vmatprep.subr.mxu0 0.0
        %1609 = vmatpush1.msra.mxu0 0.0
        %1610 = vmatprep.subr.mxu0 0.0
        %1611 = vmatpush1.msra.mxu0 0.0
        %1612 = vmatprep.subr.mxu0 0.0
        %1613 = vmatpush1.msra.mxu0 0.0
        %1614 = vmatprep.subr.mxu0 0.0
        %1615 = vmatpush1.msra.mxu0 0.0
        %1616 = vmatprep.subr.mxu0 0.0
        %1617 = vmatpush1.msra.mxu0 0.0
        %1618 = vmatprep.subr.mxu0 0.0
        %1619 = vmatpush1.msra.mxu0 0.0
        %1620 = vmatprep.subr.mxu0 0.0
        %1621 = vmatpush1.msra.mxu0 0.0
        %1622 = vmatprep.mubr.f32.mxu0 0.0
        %1623 = vmatmul.mubr.f32.gmra.mrb[0].mxu0 %v1556
        %v1624 = vpop.f32.mrb[0].mxu0
        %v1625 = vadd.f32 0.0, %v1624
        %v1626 = vpop.f32.mrb[0].mxu0
        %v1627 = vadd.f32 0.0, %v1626
        %1628 = vdwg.mxu0
        %v1630 = vsel %vm1312, %v1552, 0
        %1632 = vmatprep.subr.mxu0 %v1549
        %1633 = vmatpush1.msra.mxu0 %v1550
        %1634 = vmatprep.subr.mxu0 0.0
        %1635 = vmatpush1.msra.mxu0 0.0
        %1636 = vmatprep.subr.mxu0 0.0
        %1637 = vmatpush1.msra.mxu0 0.0
        %1638 = vmatprep.subr.mxu0 0.0
        %1639 = vmatpush1.msra.mxu0 0.0
        %1640 = vmatprep.subr.mxu0 0.0
        %1641 = vmatpush1.msra.mxu0 0.0
        %1642 = vmatprep.subr.mxu0 0.0
        %1643 = vmatpush1.msra.mxu0 0.0
        %1644 = vmatprep.subr.mxu0 0.0
        %1645 = vmatpush1.msra.mxu0 0.0
        %1646 = vmatprep.subr.mxu0 0.0
        %1647 = vmatpush1.msra.mxu0 0.0
        %1648 = vmatprep.subr.mxu0 0.0
        %1649 = vmatpush1.msra.mxu0 0.0
        %1650 = vmatprep.subr.mxu0 0.0
        %1651 = vmatpush1.msra.mxu0 0.0
        %1652 = vmatprep.subr.mxu0 0.0
        %1653 = vmatpush1.msra.mxu0 0.0
        %1654 = vmatprep.subr.mxu0 0.0
        %1655 = vmatpush1.msra.mxu0 0.0
        %1656 = vmatprep.subr.mxu0 0.0
        %1657 = vmatpush1.msra.mxu0 0.0
        %1658 = vmatprep.subr.mxu0 0.0
        %1659 = vmatpush1.msra.mxu0 0.0
        %1660 = vmatprep.subr.mxu0 0.0
        %1661 = vmatpush1.msra.mxu0 0.0
        %1662 = vmatprep.subr.mxu0 0.0
        %1663 = vmatpush1.msra.mxu0 0.0
        %1664 = vmatprep.subr.mxu0 0.0
        %1665 = vmatpush1.msra.mxu0 0.0
        %1666 = vmatprep.subr.mxu0 0.0
        %1667 = vmatpush1.msra.mxu0 0.0
        %1668 = vmatprep.subr.mxu0 0.0
        %1669 = vmatpush1.msra.mxu0 0.0
        %1670 = vmatprep.subr.mxu0 0.0
        %1671 = vmatpush1.msra.mxu0 0.0
        %1672 = vmatprep.subr.mxu0 0.0
        %1673 = vmatpush1.msra.mxu0 0.0
        %1674 = vmatprep.subr.mxu0 0.0
        %1675 = vmatpush1.msra.mxu0 0.0
        %1676 = vmatprep.subr.mxu0 0.0
        %1677 = vmatpush1.msra.mxu0 0.0
        %1678 = vmatprep.subr.mxu0 0.0
        %1679 = vmatpush1.msra.mxu0 0.0
        %1680 = vmatprep.subr.mxu0 0.0
        %1681 = vmatpush1.msra.mxu0 0.0
        %1682 = vmatprep.subr.mxu0 0.0
        %1683 = vmatpush1.msra.mxu0 0.0
        %1684 = vmatprep.subr.mxu0 0.0
        %1685 = vmatpush1.msra.mxu0 0.0
        %1686 = vmatprep.subr.mxu0 0.0
        %1687 = vmatpush1.msra.mxu0 0.0
        %1688 = vmatprep.subr.mxu0 0.0
        %1689 = vmatpush1.msra.mxu0 0.0
        %1690 = vmatprep.subr.mxu0 0.0
        %1691 = vmatpush1.msra.mxu0 0.0
        %1692 = vmatprep.subr.mxu0 0.0
        %1693 = vmatpush1.msra.mxu0 0.0
        %1694 = vmatprep.subr.mxu0 0.0
        %1695 = vmatpush1.msra.mxu0 0.0
        %1696 = vmatprep.mubr.f32.mxu0 0.0
        %1697 = vmatmul.mubr.f32.gmra.mrb[0].mxu0 %v1630
        %v1698 = vpop.f32.mrb[0].mxu0
        %v1699 = vadd.f32 %v1625, %v1698
        %v1700 = vpop.f32.mrb[0].mxu0
        %v1701 = vadd.f32 %v1627, %v1700
        %1702 = vdwg.mxu0
        %1703 = vrot.lane.b32.xlu0 %v1295, 127
        %v1704 = vpop.permute.xlu0 %1703
        %1705 = vrot.lane.b32.xlu0 %v1296, 127
        %v1706 = vpop.permute.xlu0 %1705
        %v1707 = vsel %vm923, %v1704, %v1706
        %v1708 = vsel %vm923, %v1706, %v1704
        %s1709 = scalar_lea.vmem %s6, 40
        %v1710 = vld [vmem:[%s1709] sm:$0xff]
        %v1712 = vsel %vm1312, %v1710, 0
        %1714 = vmatprep.subr.mxu0 %v1708
        %1715 = vmatpush1.msra.mxu0 %v1707
        %1716 = vmatprep.subr.mxu0 0.0
        %1717 = vmatpush1.msra.mxu0 0.0
        %1718 = vmatprep.subr.mxu0 0.0
        %1719 = vmatpush1.msra.mxu0 0.0
        %1720 = vmatprep.subr.mxu0 0.0
        %1721 = vmatpush1.msra.mxu0 0.0
        %1722 = vmatprep.subr.mxu0 0.0
        %1723 = vmatpush1.msra.mxu0 0.0
        %1724 = vmatprep.subr.mxu0 0.0
        %1725 = vmatpush1.msra.mxu0 0.0
        %1726 = vmatprep.subr.mxu0 0.0
        %1727 = vmatpush1.msra.mxu0 0.0
        %1728 = vmatprep.subr.mxu0 0.0
        %1729 = vmatpush1.msra.mxu0 0.0
        %1730 = vmatprep.subr.mxu0 0.0
        %1731 = vmatpush1.msra.mxu0 0.0
        %1732 = vmatprep.subr.mxu0 0.0
        %1733 = vmatpush1.msra.mxu0 0.0
        %1734 = vmatprep.subr.mxu0 0.0
        %1735 = vmatpush1.msra.mxu0 0.0
        %1736 = vmatprep.subr.mxu0 0.0
        %1737 = vmatpush1.msra.mxu0 0.0
        %1738 = vmatprep.subr.mxu0 0.0
        %1739 = vmatpush1.msra.mxu0 0.0
        %1740 = vmatprep.subr.mxu0 0.0
        %1741 = vmatpush1.msra.mxu0 0.0
        %1742 = vmatprep.subr.mxu0 0.0
        %1743 = vmatpush1.msra.mxu0 0.0
        %1744 = vmatprep.subr.mxu0 0.0
        %1745 = vmatpush1.msra.mxu0 0.0
        %1746 = vmatprep.subr.mxu0 0.0
        %1747 = vmatpush1.msra.mxu0 0.0
        %1748 = vmatprep.subr.mxu0 0.0
        %1749 = vmatpush1.msra.mxu0 0.0
        %1750 = vmatprep.subr.mxu0 0.0
        %1751 = vmatpush1.msra.mxu0 0.0
        %1752 = vmatprep.subr.mxu0 0.0
        %1753 = vmatpush1.msra.mxu0 0.0
        %1754 = vmatprep.subr.mxu0 0.0
        %1755 = vmatpush1.msra.mxu0 0.0
        %1756 = vmatprep.subr.mxu0 0.0
        %1757 = vmatpush1.msra.mxu0 0.0
        %1758 = vmatprep.subr.mxu0 0.0
        %1759 = vmatpush1.msra.mxu0 0.0
        %1760 = vmatprep.subr.mxu0 0.0
        %1761 = vmatpush1.msra.mxu0 0.0
        %1762 = vmatprep.subr.mxu0 0.0
        %1763 = vmatpush1.msra.mxu0 0.0
        %1764 = vmatprep.subr.mxu0 0.0
        %1765 = vmatpush1.msra.mxu0 0.0
        %1766 = vmatprep.subr.mxu0 0.0
        %1767 = vmatpush1.msra.mxu0 0.0
        %1768 = vmatprep.subr.mxu0 0.0
        %1769 = vmatpush1.msra.mxu0 0.0
        %1770 = vmatprep.subr.mxu0 0.0
        %1771 = vmatpush1.msra.mxu0 0.0
        %1772 = vmatprep.subr.mxu0 0.0
        %1773 = vmatpush1.msra.mxu0 0.0
        %1774 = vmatprep.subr.mxu0 0.0
        %1775 = vmatpush1.msra.mxu0 0.0
        %1776 = vmatprep.subr.mxu0 0.0
        %1777 = vmatpush1.msra.mxu0 0.0
        %1778 = vmatprep.mubr.f32.mxu0 0.0
        %1779 = vmatmul.mubr.f32.gmra.mrb[0].mxu0 %v1712
        %v1780 = vpop.f32.mrb[0].mxu0
        %v1781 = vadd.f32 0.0, %v1780
        %v1782 = vpop.f32.mrb[0].mxu0
        %v1783 = vadd.f32 0.0, %v1782
        %1784 = vdwg.mxu0
        %v1785 = vadd.f32 %v1699, %v1781
        %v1786 = vadd.f32 %v1701, %v1783
        %1787 = vrot.lane.b32.xlu0 %v1293, 113
        %v1788 = vpop.permute.xlu0 %1787
        %1789 = vrot.lane.b32.xlu0 %v1294, 113
        %v1790 = vpop.permute.xlu0 %1789
        %v1791 = vsel %vm1014, %v1788, %v1790
        %v1792 = vsel %vm1014, %v1790, %v1788
        %s1793 = scalar_lea.vmem %s6, 48
        %v1794 = vld [vmem:[%s1793] sm:$0xff]
        %1795 = vrot.lane.b32.xlu0 %v1290, 112
        %v1796 = vpop.permute.xlu0 %1795
        %1797 = vrot.lane.b32.xlu0 %v1291, 112
        %v1798 = vpop.permute.xlu0 %1797
        %v1799 = vsel %vm1029, %v1796, %v1798
        %v1800 = vsel %vm1029, %v1798, %v1796
        %s1801 = scalar_lea.vmem %s6, 56
        %v1802 = vld [vmem:[%s1801] sm:$0xff]
        %v1804 = vsel %vm1312, %v1802, 0
        %1806 = vmatprep.subr.mxu0 %v1800
        %1807 = vmatpush1.msra.mxu0 %v1799
        %1808 = vmatprep.subr.mxu0 0.0
        %1809 = vmatpush1.msra.mxu0 0.0
        %1810 = vmatprep.subr.mxu0 0.0
        %1811 = vmatpush1.msra.mxu0 0.0
        %1812 = vmatprep.subr.mxu0 0.0
        %1813 = vmatpush1.msra.mxu0 0.0
        %1814 = vmatprep.subr.mxu0 0.0
        %1815 = vmatpush1.msra.mxu0 0.0
        %1816 = vmatprep.subr.mxu0 0.0
        %1817 = vmatpush1.msra.mxu0 0.0
        %1818 = vmatprep.subr.mxu0 0.0
        %1819 = vmatpush1.msra.mxu0 0.0
        %1820 = vmatprep.subr.mxu0 0.0
        %1821 = vmatpush1.msra.mxu0 0.0
        %1822 = vmatprep.subr.mxu0 0.0
        %1823 = vmatpush1.msra.mxu0 0.0
        %1824 = vmatprep.subr.mxu0 0.0
        %1825 = vmatpush1.msra.mxu0 0.0
        %1826 = vmatprep.subr.mxu0 0.0
        %1827 = vmatpush1.msra.mxu0 0.0
        %1828 = vmatprep.subr.mxu0 0.0
        %1829 = vmatpush1.msra.mxu0 0.0
        %1830 = vmatprep.subr.mxu0 0.0
        %1831 = vmatpush1.msra.mxu0 0.0
        %1832 = vmatprep.subr.mxu0 0.0
        %1833 = vmatpush1.msra.mxu0 0.0
        %1834 = vmatprep.subr.mxu0 0.0
        %1835 = vmatpush1.msra.mxu0 0.0
        %1836 = vmatprep.subr.mxu0 0.0
        %1837 = vmatpush1.msra.mxu0 0.0
        %1838 = vmatprep.subr.mxu0 0.0
        %1839 = vmatpush1.msra.mxu0 0.0
        %1840 = vmatprep.subr.mxu0 0.0
        %1841 = vmatpush1.msra.mxu0 0.0
        %1842 = vmatprep.subr.mxu0 0.0
        %1843 = vmatpush1.msra.mxu0 0.0
        %1844 = vmatprep.subr.mxu0 0.0
        %1845 = vmatpush1.msra.mxu0 0.0
        %1846 = vmatprep.subr.mxu0 0.0
        %1847 = vmatpush1.msra.mxu0 0.0
        %1848 = vmatprep.subr.mxu0 0.0
        %1849 = vmatpush1.msra.mxu0 0.0
        %1850 = vmatprep.subr.mxu0 0.0
        %1851 = vmatpush1.msra.mxu0 0.0
        %1852 = vmatprep.subr.mxu0 0.0
        %1853 = vmatpush1.msra.mxu0 0.0
        %1854 = vmatprep.subr.mxu0 0.0
        %1855 = vmatpush1.msra.mxu0 0.0
        %1856 = vmatprep.subr.mxu0 0.0
        %1857 = vmatpush1.msra.mxu0 0.0
        %1858 = vmatprep.subr.mxu0 0.0
        %1859 = vmatpush1.msra.mxu0 0.0
        %1860 = vmatprep.subr.mxu0 0.0
        %1861 = vmatpush1.msra.mxu0 0.0
        %1862 = vmatprep.subr.mxu0 0.0
        %1863 = vmatpush1.msra.mxu0 0.0
        %1864 = vmatprep.subr.mxu0 0.0
        %1865 = vmatpush1.msra.mxu0 0.0
        %1866 = vmatprep.subr.mxu0 0.0
        %1867 = vmatpush1.msra.mxu0 0.0
        %1868 = vmatprep.subr.mxu0 0.0
        %1869 = vmatpush1.msra.mxu0 0.0
        %1870 = vmatprep.mubr.f32.mxu0 0.0
        %1871 = vmatmul.mubr.f32.gmra.mrb[0].mxu0 %v1804
        %v1872 = vpop.f32.mrb[0].mxu0
        %v1873 = vadd.f32 0.0, %v1872
        %v1874 = vpop.f32.mrb[0].mxu0
        %v1875 = vadd.f32 0.0, %v1874
        %1876 = vdwg.mxu0
        %v1878 = vsel %vm1312, %v1794, 0
        %1880 = vmatprep.subr.mxu0 %v1792
        %1881 = vmatpush1.msra.mxu0 %v1791
        %1882 = vmatprep.subr.mxu0 0.0
        %1883 = vmatpush1.msra.mxu0 0.0
        %1884 = vmatprep.subr.mxu0 0.0
        %1885 = vmatpush1.msra.mxu0 0.0
        %1886 = vmatprep.subr.mxu0 0.0
        %1887 = vmatpush1.msra.mxu0 0.0
        %1888 = vmatprep.subr.mxu0 0.0
        %1889 = vmatpush1.msra.mxu0 0.0
        %1890 = vmatprep.subr.mxu0 0.0
        %1891 = vmatpush1.msra.mxu0 0.0
        %1892 = vmatprep.subr.mxu0 0.0
        %1893 = vmatpush1.msra.mxu0 0.0
        %1894 = vmatprep.subr.mxu0 0.0
        %1895 = vmatpush1.msra.mxu0 0.0
        %1896 = vmatprep.subr.mxu0 0.0
        %1897 = vmatpush1.msra.mxu0 0.0
        %1898 = vmatprep.subr.mxu0 0.0
        %1899 = vmatpush1.msra.mxu0 0.0
        %1900 = vmatprep.subr.mxu0 0.0
        %1901 = vmatpush1.msra.mxu0 0.0
        %1902 = vmatprep.subr.mxu0 0.0
        %1903 = vmatpush1.msra.mxu0 0.0
        %1904 = vmatprep.subr.mxu0 0.0
        %1905 = vmatpush1.msra.mxu0 0.0
        %1906 = vmatprep.subr.mxu0 0.0
        %1907 = vmatpush1.msra.mxu0 0.0
        %1908 = vmatprep.subr.mxu0 0.0
        %1909 = vmatpush1.msra.mxu0 0.0
        %1910 = vmatprep.subr.mxu0 0.0
        %1911 = vmatpush1.msra.mxu0 0.0
        %1912 = vmatprep.subr.mxu0 0.0
        %1913 = vmatpush1.msra.mxu0 0.0
        %1914 = vmatprep.subr.mxu0 0.0
        %1915 = vmatpush1.msra.mxu0 0.0
        %1916 = vmatprep.subr.mxu0 0.0
        %1917 = vmatpush1.msra.mxu0 0.0
        %1918 = vmatprep.subr.mxu0 0.0
        %1919 = vmatpush1.msra.mxu0 0.0
        %1920 = vmatprep.subr.mxu0 0.0
        %1921 = vmatpush1.msra.mxu0 0.0
        %1922 = vmatprep.subr.mxu0 0.0
        %1923 = vmatpush1.msra.mxu0 0.0
        %1924 = vmatprep.subr.mxu0 0.0
        %1925 = vmatpush1.msra.mxu0 0.0
        %1926 = vmatprep.subr.mxu0 0.0
        %1927 = vmatpush1.msra.mxu0 0.0
        %1928 = vmatprep.subr.mxu0 0.0
        %1929 = vmatpush1.msra.mxu0 0.0
        %1930 = vmatprep.subr.mxu0 0.0
        %1931 = vmatpush1.msra.mxu0 0.0
        %1932 = vmatprep.subr.mxu0 0.0
        %1933 = vmatpush1.msra.mxu0 0.0
        %1934 = vmatprep.subr.mxu0 0.0
        %1935 = vmatpush1.msra.mxu0 0.0
        %1936 = vmatprep.subr.mxu0 0.0
        %1937 = vmatpush1.msra.mxu0 0.0
        %1938 = vmatprep.subr.mxu0 0.0
        %1939 = vmatpush1.msra.mxu0 0.0
        %1940 = vmatprep.subr.mxu0 0.0
        %1941 = vmatpush1.msra.mxu0 0.0
        %1942 = vmatprep.subr.mxu0 0.0
        %1943 = vmatpush1.msra.mxu0 0.0
        %1944 = vmatprep.mubr.f32.mxu0 0.0
        %1945 = vmatmul.mubr.f32.gmra.mrb[0].mxu0 %v1878
        %v1946 = vpop.f32.mrb[0].mxu0
        %v1947 = vadd.f32 %v1873, %v1946
        %v1948 = vpop.f32.mrb[0].mxu0
        %v1949 = vadd.f32 %v1875, %v1948
        %1950 = vdwg.mxu0
        %1951 = vrot.lane.b32.xlu0 %v1295, 111
        %v1952 = vpop.permute.xlu0 %1951
        %1953 = vrot.lane.b32.xlu0 %v1296, 111
        %v1954 = vpop.permute.xlu0 %1953
        %v1955 = vsel %vm1192, %v1952, %v1954
        %v1956 = vsel %vm1192, %v1954, %v1952
        %s1957 = scalar_lea.vmem %s6, 64
        %v1958 = vld [vmem:[%s1957] sm:$0xff]
        %v1960 = vsel %vm1312, %v1958, 0
        %1962 = vmatprep.subr.mxu0 %v1956
        %1963 = vmatpush1.msra.mxu0 %v1955
        %1964 = vmatprep.subr.mxu0 0.0
        %1965 = vmatpush1.msra.mxu0 0.0
        %1966 = vmatprep.subr.mxu0 0.0
        %1967 = vmatpush1.msra.mxu0 0.0
        %1968 = vmatprep.subr.mxu0 0.0
        %1969 = vmatpush1.msra.mxu0 0.0
        %1970 = vmatprep.subr.mxu0 0.0
        %1971 = vmatpush1.msra.mxu0 0.0
        %1972 = vmatprep.subr.mxu0 0.0
        %1973 = vmatpush1.msra.mxu0 0.0
        %1974 = vmatprep.subr.mxu0 0.0
        %1975 = vmatpush1.msra.mxu0 0.0
        %1976 = vmatprep.subr.mxu0 0.0
        %1977 = vmatpush1.msra.mxu0 0.0
        %1978 = vmatprep.subr.mxu0 0.0
        %1979 = vmatpush1.msra.mxu0 0.0
        %1980 = vmatprep.subr.mxu0 0.0
        %1981 = vmatpush1.msra.mxu0 0.0
        %1982 = vmatprep.subr.mxu0 0.0
        %1983 = vmatpush1.msra.mxu0 0.0
        %1984 = vmatprep.subr.mxu0 0.0
        %1985 = vmatpush1.msra.mxu0 0.0
        %1986 = vmatprep.subr.mxu0 0.0
        %1987 = vmatpush1.msra.mxu0 0.0
        %1988 = vmatprep.subr.mxu0 0.0
        %1989 = vmatpush1.msra.mxu0 0.0
        %1990 = vmatprep.subr.mxu0 0.0
        %1991 = vmatpush1.msra.mxu0 0.0
        %1992 = vmatprep.subr.mxu0 0.0
        %1993 = vmatpush1.msra.mxu0 0.0
        %1994 = vmatprep.subr.mxu0 0.0
        %1995 = vmatpush1.msra.mxu0 0.0
        %1996 = vmatprep.subr.mxu0 0.0
        %1997 = vmatpush1.msra.mxu0 0.0
        %1998 = vmatprep.subr.mxu0 0.0
        %1999 = vmatpush1.msra.mxu0 0.0
        %2000 = vmatprep.subr.mxu0 0.0
        %2001 = vmatpush1.msra.mxu0 0.0
        %2002 = vmatprep.subr.mxu0 0.0
        %2003 = vmatpush1.msra.mxu0 0.0
        %2004 = vmatprep.subr.mxu0 0.0
        %2005 = vmatpush1.msra.mxu0 0.0
        %2006 = vmatprep.subr.mxu0 0.0
        %2007 = vmatpush1.msra.mxu0 0.0
        %2008 = vmatprep.subr.mxu0 0.0
        %2009 = vmatpush1.msra.mxu0 0.0
        %2010 = vmatprep.subr.mxu0 0.0
        %2011 = vmatpush1.msra.mxu0 0.0
        %2012 = vmatprep.subr.mxu0 0.0
        %2013 = vmatpush1.msra.mxu0 0.0
        %2014 = vmatprep.subr.mxu0 0.0
        %2015 = vmatpush1.msra.mxu0 0.0
        %2016 = vmatprep.subr.mxu0 0.0
        %2017 = vmatpush1.msra.mxu0 0.0
        %2018 = vmatprep.subr.mxu0 0.0
        %2019 = vmatpush1.msra.mxu0 0.0
        %2020 = vmatprep.subr.mxu0 0.0
        %2021 = vmatpush1.msra.mxu0 0.0
        %2022 = vmatprep.subr.mxu0 0.0
        %2023 = vmatpush1.msra.mxu0 0.0
        %2024 = vmatprep.subr.mxu0 0.0
        %2025 = vmatpush1.msra.mxu0 0.0
        %2026 = vmatprep.mubr.f32.mxu0 0.0
        %2027 = vmatmul.mubr.f32.gmra.mrb[0].mxu0 %v1960
        %v2028 = vpop.f32.mrb[0].mxu0
        %v2029 = vadd.f32 0.0, %v2028
        %v2030 = vpop.f32.mrb[0].mxu0
        %v2031 = vadd.f32 0.0, %v2030
        %2032 = vdwg.mxu0
        %v2033 = vadd.f32 %v1947, %v2029
        %v2034 = vadd.f32 %v1949, %v2031
        %v2035 = vmul.f32 %v1543, %v399
        %v2036 = vmul.f32 %v1544, %v400
        %v2037 = vadd.f32 %v2035, %v1785
        %v2038 = vadd.f32 %v2036, %v1786
        %v2039 = vmul.f32 %v2033, %v405
        %v2040 = vmul.f32 %v2034, %v406
        %v2041 = vadd.f32 %v2037, %v2039
        %v2042 = vadd.f32 %v2038, %v2040
        %2044 = vset.pattern.permute.xlu0 0
        %2045 = vperm.xlu0 %2044, %v1292
        %v2046 = vpop.permute.xlu0 %2045
        %v2048 = vadd.f32 %v2041, %v2046
        %v2049 = vadd.f32 %v2042, %v2046
        %v2050 = vmax.f32 %v2048, 0.0
        %v2051 = vmax.f32 %v2049, 0.0
        %2052 = vst [vmem:[%s370] sm:$0xff] %v2050
        %2053 = vst [vmem:[%s370 + $0x8] sm:$0xff] %v2051
        %s2054 = sand.u32 %s240, 1
        %s2055 = scalar_lea.sflag [#allocation4], %s2054
        %s2056 = sand.u32 %s240, 1
        %s2057 = smul.addr %s2056, 16
        %s2058 = scalar_lea.vmem [#allocation3], %s2057
        // Predicated region
        $region57: #{tpu_custom_call.1} parent=55 // pred_check
          %p2059 = pneg %p250
        $region58: #{tpu_custom_call.1} parent=55 // pred_check_branch
          %2061 = sbr.rel (%p2059) target = $region60
        $region59: #{tpu_custom_call.1} parent=55 // pred_region
          %s2063 = ssub.s32 256, 256
          %2064 = vsyncadd %s2055, %s2063
          %s2065 = smul.addr %s23, 2
          %s2066 = smul.addr %s2065, 128
          %s2067 = scalar_lea.hbm %s9, %s2066
          %s2069 = sshll.u32 %s2058, 4
          %s2070 = int_to_ptr.vmem [resolvable:$true] %s2069
          %2072 = dma.vmem_to_hbm [thread:$0]  %s2070, 256, %s2067, %s2055
        $region60: #{tpu_custom_call.1} parent=55 // pred_fallthru
          _
      $region56: #{tpu_custom_call.1} parent=5 // pred_fallthru
        _
      %p2073 = scmp.le.s32.totalorder 2, %s18
      // Predicated region
      $region61: #{tpu_custom_call.1} parent=5 // pred_check
        %p2074 = pneg %p2073
      $region62: #{tpu_custom_call.1} parent=5 // pred_check_branch
        %2076 = sbr.rel (%p2074) target = $region64
      $region63: #{tpu_custom_call.1} parent=5 // pred_region
        %s2077 = ssub.s32 %s18, 2
        // Predicated region
        $region65: #{tpu_custom_call.1} parent=63 // pred_check
          %p2078 = pneg %p256
        $region66: #{tpu_custom_call.1} parent=63 // pred_check_branch
          %2080 = sbr.rel (%p2078) target = $region68
        $region67: #{tpu_custom_call.1} parent=63 // pred_region
          %s2081 = sand.u32 %s241, 1
          %s2082 = scalar_lea.sflag [#allocation4], %s2081
          %s2083 = sand.u32 %s241, 1
          %s2084 = smul.addr %s2083, 16
          %s2085 = scalar_lea.vmem [#allocation3], %s2084
          %2086 = dma.done %s2082, 256
        $region68: #{tpu_custom_call.1} parent=63 // pred_fallthru
          _
      $region64: #{tpu_custom_call.1} parent=5 // pred_fallthru
        _
    $region6: #{tpu_custom_call.1} parent=1 // loop_footer
      %s22 = sadd.s32 1, %s18
    $region7: #{tpu_custom_call.1} parent=1 // loop_footer_branch
      %17 = sbr.rel target = $region3
    $region8: #{tpu_custom_call.1} parent=1 // loop_exit
      _
    %2087 = vsyncpa [#allocation4], 1
    %s2088 = scalar_lea.sflag [#allocation4], 1
    %2089 = vsyncpa %s2088, 1

</llo_original>
